<compile_context>
chip_gen: v6e
topology: v6e:2x2x1
jax: 0.10.0
libtpu: 0.0.40
codegen_flags: <defaults>
</compile_context>

<pallas_src>
import functools

import jax
import jax.numpy as jnp
from jax.experimental import pallas as pl
from jax.experimental.pallas import tpu as pltpu


OUT_DIM = 2                         # true logits width
OUT_PAD = 128                       # lane-dense padded logits width
LAYER_DIMS = (256, 512, 256, 128, 64, OUT_DIM)


def _round_up(x, m):
    return ((x + m - 1) // m) * m


def _elementwise_dtype():
    """bf16 bias/ReLU/intermediates on v6e/v7x (native bf16 VPU); f32 on older chips."""
    try:
        kind = jax.devices()[0].device_kind.lower()
    except Exception:
        kind = ""
    if any(v in kind for v in ("v2", "v3", "v4", "v5")):
        return jnp.float32
    return jnp.bfloat16


EW_DTYPE = _elementwise_dtype()


def _mlp_kernel(x_ref,
                w1_ref, b1_ref, w2_ref, b2_ref, w3_ref, b3_ref,
                w4_ref, b4_ref, w5_ref, b5_ref, w6_ref, b6_ref,
                o_ref, *, ew_dtype):
    """Fused 6-layer MLP on one (B_TILE, input_dim) batch tile.

    Weights are bf16 (MXU native); matmuls accumulate in f32; bias-add / ReLU run in
    `ew_dtype` (bf16 on v6e/v7x, f32 on v5e). Eval-mode dropout is identity -> omitted.
    """
    zero = jnp.zeros((), ew_dtype)

    def dense(h_bf16, w_ref, b_ref, relu):
        y = jnp.dot(h_bf16, w_ref[...], preferred_element_type=jnp.float32)
        y = y.astype(ew_dtype) + b_ref[...]          # (1, N) bias broadcasts over rows
        if relu:
            y = jnp.maximum(y, zero)
        return y

    h = x_ref[...]                                                 # already bf16
    h = dense(h, w1_ref, b1_ref, True).astype(jnp.bfloat16)        # [B, 256]
    h = dense(h, w2_ref, b2_ref, True).astype(jnp.bfloat16)        # [B, 512]
    h = dense(h, w3_ref, b3_ref, True).astype(jnp.bfloat16)        # [B, 256]
    h = dense(h, w4_ref, b4_ref, True).astype(jnp.bfloat16)        # [B, 128]
    h = dense(h, w5_ref, b5_ref, True).astype(jnp.bfloat16)        # [B, 128] (cols >=64 zero)
    out = dense(h, w6_ref, b6_ref, False)                          # [B, OUT_PAD] (cols >=2 zero)
    o_ref[...] = out.astype(o_ref.dtype)


def _choose_tiling(batch):
    """Pick (b_tile, padded_batch): tile up to 512 rows, always >= 2 grid steps."""
    b_tile = min(512, _round_up(max(batch // 2, 1), 128))
    padded_batch = _round_up(batch, b_tile)
    if padded_batch // b_tile < 2:       # guarantee both v7x TensorCores get work
        padded_batch = 2 * b_tile
    return b_tile, padded_batch


@jax.jit
def denser_nn_forward(x, kernel_params):
    """x: [batch, input_dim] f32. kernel_params: list of (W_bf16 [in,out], b [1,out]) as
    produced by prepare_params (last two layers padded to 128-wide lane-dense shapes)."""
    batch, input_dim = x.shape
    b_tile, padded_batch = _choose_tiling(batch)

    x = x.astype(jnp.bfloat16)                      # halve x DMA bytes; MXU eats bf16
    if padded_batch != batch:
        x = jnp.pad(x, ((0, padded_batch - batch), (0, 0)))

    flat_args = [x]
    for w, b in kernel_params:
        flat_args.extend([w, b])

    # x / out tiled over the batch grid; weights & biases full-shape with a constant
    # index_map -> fetched once, resident in VMEM across all grid steps.
    x_spec = pl.BlockSpec((b_tile, input_dim), lambda i: (i, 0))
    out_spec = pl.BlockSpec((b_tile, OUT_PAD), lambda i: (i, 0))
    param_specs = []
    for w, b in kernel_params:
        param_specs.append(pl.BlockSpec(w.shape, lambda i: (0, 0)))
        param_specs.append(pl.BlockSpec(b.shape, lambda i: (0, 0)))

    flops = 2 * padded_batch * sum(int(w.shape[0]) * int(w.shape[1])
                                   for w, _ in kernel_params)
    bytes_accessed = (x.size * x.dtype.itemsize
                      + sum(w.size * w.dtype.itemsize + b.size * b.dtype.itemsize
                            for w, b in kernel_params)
                      + padded_batch * OUT_PAD * 2)          # bf16 output slab

    out_padded = pl.pallas_call(
        functools.partial(_mlp_kernel, ew_dtype=EW_DTYPE),
        out_shape=jax.ShapeDtypeStruct((padded_batch, OUT_PAD), jnp.bfloat16),
        grid_spec=pltpu.PrefetchScalarGridSpec(
            num_scalar_prefetch=0,
            grid=(padded_batch // b_tile,),
            in_specs=[x_spec] + param_specs,
            out_specs=out_spec,
        ),
        compiler_params=pltpu.CompilerParams(
            dimension_semantics=("parallel",),        # megacore sharding on v7x
            vmem_limit_bytes=32 * 1024 * 1024,        # plenty: <8 MiB live even at tile=512
        ),
        cost_estimate=pl.CostEstimate(
            flops=flops, transcendentals=0, bytes_accessed=bytes_accessed),
    )(*flat_args)

    return out_padded[:batch, :OUT_DIM].astype(jnp.float32)


def init_params(key, input_dim):
    """Deterministic init mimicking PyTorch nn.Linear default:
    uniform(-1/sqrt(fan_in), 1/sqrt(fan_in)) for both W and b. W stored [in, out]."""
    dims = [input_dim] + list(LAYER_DIMS)
    params = []
    for i in range(len(dims) - 1):
        fan_in, fan_out = dims[i], dims[i + 1]
        key, kw, kb = jax.random.split(key, 3)
        bound = 1.0 / jnp.sqrt(float(fan_in))
        w = jax.random.uniform(kw, (fan_in, fan_out), jnp.float32, -bound, bound)
        b = jax.random.uniform(kb, (1, fan_out), jnp.float32, -bound, bound)
        params.append((w, b))
    return params


def prepare_params(params):
    """f32 [in,out] params -> kernel params: bf16 weights, EW_DTYPE biases.
    Layer-5 output and layer-6 input/output are zero-padded to 128 so every matmul
    dimension is lane-dense (128-multiple)."""
    n = len(params)
    kparams = []
    for i, (w, b) in enumerate(params):
        in_pad = _round_up(w.shape[0], 128) - w.shape[0] if i == n - 1 else 0
        out_pad = _round_up(w.shape[1], 128) - w.shape[1] if i >= n - 2 else 0
        if in_pad or out_pad:
            w = jnp.pad(w, ((0, in_pad), (0, out_pad)))
            b = jnp.pad(b, ((0, 0), (0, out_pad)))
        kparams.append((w.astype(jnp.bfloat16), b.astype(EW_DTYPE)))
    return kparams


def reference_forward_f32(x, params):
    """Pure-f32 forward matching the PyTorch module in eval mode."""
    h = x
    for i, (w, b) in enumerate(params):
        h = h @ w + b
        if i < len(params) - 1:
            h = jnp.maximum(h, 0.0)
    return h


def reference_forward_quantized(x, kparams):
    """Reference mirroring the kernel's exact dtype path (bf16 MXU inputs, EW_DTYPE
    bias/ReLU, bf16 output store) for a tight numerical check."""
    h = x.astype(jnp.bfloat16)
    n = len(kparams)
    for i, (w, b) in enumerate(kparams):
        y = jnp.dot(h, w, preferred_element_type=jnp.float32).astype(EW_DTYPE) + b
        if i < n - 1:
            h = jnp.maximum(y, jnp.zeros((), EW_DTYPE)).astype(jnp.bfloat16)
        else:
            h = y
    return h.astype(jnp.bfloat16)[:, :OUT_DIM].astype(jnp.float32)


if __name__ == "__main__":
    key = jax.random.PRNGKey(0)
    key, kx = jax.random.split(key)

    batch, input_dim = 8, 32
    x = jax.random.normal(kx, (batch, input_dim), dtype=jnp.float32)

    params = init_params(key, input_dim)
    kparams = prepare_params(params)

    out = denser_nn_forward(x, kparams)
    out = jax.block_until_ready(out)
    assert out.shape == (batch, OUT_DIM), out.shape
    assert bool(jnp.all(jnp.isfinite(out)))

    # Tight numerical check vs a JAX reference using identical quantization.
    ref_q = reference_forward_quantized(x, kparams)
    assert jnp.allclose(out, ref_q, atol=2e-2, rtol=2e-2), "mismatch vs quantized reference"

    # Looser semantic check vs the full-f32 PyTorch-equivalent forward (bf16 everywhere
    # in the kernel, so only coarse agreement is expected).
    ref_f32 = reference_forward_f32(x, params)
    assert jnp.allclose(out, ref_f32, atol=1e-1, rtol=1e-1), "mismatch vs f32 reference"

    print("KERNEL_OK")
</pallas_src>

<mosaic_0001>
module attributes {stable_mosaic.version = 11 : i64} {
  func.func @_mlp_kernel(%arg0: i32, %arg1: memref<128x32xbf16, #tpu.memory_space<vmem>>, %arg2: memref<32x256xbf16, #tpu.memory_space<vmem>>, %arg3: memref<1x256xbf16, #tpu.memory_space<vmem>>, %arg4: memref<256x512xbf16, #tpu.memory_space<vmem>>, %arg5: memref<1x512xbf16, #tpu.memory_space<vmem>>, %arg6: memref<512x256xbf16, #tpu.memory_space<vmem>>, %arg7: memref<1x256xbf16, #tpu.memory_space<vmem>>, %arg8: memref<256x128xbf16, #tpu.memory_space<vmem>>, %arg9: memref<1x128xbf16, #tpu.memory_space<vmem>>, %arg10: memref<128x128xbf16, #tpu.memory_space<vmem>>, %arg11: memref<1x128xbf16, #tpu.memory_space<vmem>>, %arg12: memref<128x128xbf16, #tpu.memory_space<vmem>>, %arg13: memref<1x128xbf16, #tpu.memory_space<vmem>>, %arg14: memref<128x128xbf16, #tpu.memory_space<vmem>>) attributes {dimension_semantics = [#tpu.dimension_semantics<parallel>], iteration_bounds = array<i64: 2>, scalar_prefetch = 0 : i64, scratch_operands = 0 : i64, tpu.core_type = #tpu.core_type<tc>, window_params = [{transform_indices = @transform_0, window_bounds = array<i64: 128, 32>}, {pipeline_mode = #tpu.pipeline_mode<synchronous>, transform_indices = @transform_1, window_bounds = array<i64: 32, 256>}, {pipeline_mode = #tpu.pipeline_mode<synchronous>, transform_indices = @transform_2, window_bounds = array<i64: 1, 256>}, {pipeline_mode = #tpu.pipeline_mode<synchronous>, transform_indices = @transform_3, window_bounds = array<i64: 256, 512>}, {pipeline_mode = #tpu.pipeline_mode<synchronous>, transform_indices = @transform_4, window_bounds = array<i64: 1, 512>}, {pipeline_mode = #tpu.pipeline_mode<synchronous>, transform_indices = @transform_5, window_bounds = array<i64: 512, 256>}, {pipeline_mode = #tpu.pipeline_mode<synchronous>, transform_indices = @transform_6, window_bounds = array<i64: 1, 256>}, {pipeline_mode = #tpu.pipeline_mode<synchronous>, transform_indices = @transform_7, window_bounds = array<i64: 256, 128>}, {pipeline_mode = #tpu.pipeline_mode<synchronous>, transform_indices = @transform_8, window_bounds = array<i64: 1, 128>}, {pipeline_mode = #tpu.pipeline_mode<synchronous>, transform_indices = @transform_9, window_bounds = array<i64: 128, 128>}, {pipeline_mode = #tpu.pipeline_mode<synchronous>, transform_indices = @transform_10, window_bounds = array<i64: 1, 128>}, {pipeline_mode = #tpu.pipeline_mode<synchronous>, transform_indices = @transform_11, window_bounds = array<i64: 128, 128>}, {pipeline_mode = #tpu.pipeline_mode<synchronous>, transform_indices = @transform_12, window_bounds = array<i64: 1, 128>}, {transform_indices = @transform_13, window_bounds = array<i64: 128, 128>}]} {
    %c0 = arith.constant 0 : index
    %c0_0 = arith.constant 0 : index
    %0 = vector.load %arg1[%c0, %c0_0] : memref<128x32xbf16, #tpu.memory_space<vmem>>, vector<128x32xbf16>
    %c0_1 = arith.constant 0 : index
    %c0_2 = arith.constant 0 : index
    %1 = vector.load %arg2[%c0_1, %c0_2] : memref<32x256xbf16, #tpu.memory_space<vmem>>, vector<32x256xbf16>
    %cst = arith.constant dense<0.000000e+00> : vector<128x256xf32>
    %2 = tpu.matmul %0, %1, %cst {dimension_numbers = #tpu.dot_dimension_numbers<[1], [0], [0], [1], [0, 0, 1, 1], [], []>} : vector<128x32xbf16>, vector<32x256xbf16>, vector<128x256xf32> -> vector<128x256xf32>
    %3 = arith.truncf %2 : vector<128x256xf32> to vector<128x256xbf16>
    %c0_3 = arith.constant 0 : index
    %c0_4 = arith.constant 0 : index
    %4 = vector.load %arg3[%c0_3, %c0_4] : memref<1x256xbf16, #tpu.memory_space<vmem>>, vector<1x256xbf16>
    %5 = vector.broadcast %4 : vector<1x256xbf16> to vector<128x256xbf16>
    %6 = arith.addf %3, %5 : vector<128x256xbf16>
    %cst_5 = arith.constant 0.000000e+00 : bf16
    %7 = vector.broadcast %cst_5 : bf16 to vector<128x256xbf16>
    %8 = arith.maximumf %6, %7 : vector<128x256xbf16>
    %c0_6 = arith.constant 0 : index
    %c0_7 = arith.constant 0 : index
    %9 = vector.load %arg4[%c0_6, %c0_7] : memref<256x512xbf16, #tpu.memory_space<vmem>>, vector<256x512xbf16>
    %cst_8 = arith.constant dense<0.000000e+00> : vector<128x512xf32>
    %10 = tpu.matmul %8, %9, %cst_8 {dimension_numbers = #tpu.dot_dimension_numbers<[1], [0], [0], [1], [0, 0, 1, 1], [], []>} : vector<128x256xbf16>, vector<256x512xbf16>, vector<128x512xf32> -> vector<128x512xf32>
    %11 = arith.truncf %10 : vector<128x512xf32> to vector<128x512xbf16>
    %c0_9 = arith.constant 0 : index
    %c0_10 = arith.constant 0 : index
    %12 = vector.load %arg5[%c0_9, %c0_10] : memref<1x512xbf16, #tpu.memory_space<vmem>>, vector<1x512xbf16>
    %13 = vector.broadcast %12 : vector<1x512xbf16> to vector<128x512xbf16>
    %14 = arith.addf %11, %13 : vector<128x512xbf16>
    %cst_11 = arith.constant 0.000000e+00 : bf16
    %15 = vector.broadcast %cst_11 : bf16 to vector<128x512xbf16>
    %16 = arith.maximumf %14, %15 : vector<128x512xbf16>
    %c0_12 = arith.constant 0 : index
    %c0_13 = arith.constant 0 : index
    %17 = vector.load %arg6[%c0_12, %c0_13] : memref<512x256xbf16, #tpu.memory_space<vmem>>, vector<512x256xbf16>
    %cst_14 = arith.constant dense<0.000000e+00> : vector<128x256xf32>
    %18 = tpu.matmul %16, %17, %cst_14 {dimension_numbers = #tpu.dot_dimension_numbers<[1], [0], [0], [1], [0, 0, 1, 1], [], []>} : vector<128x512xbf16>, vector<512x256xbf16>, vector<128x256xf32> -> vector<128x256xf32>
    %19 = arith.truncf %18 : vector<128x256xf32> to vector<128x256xbf16>
    %c0_15 = arith.constant 0 : index
    %c0_16 = arith.constant 0 : index
    %20 = vector.load %arg7[%c0_15, %c0_16] : memref<1x256xbf16, #tpu.memory_space<vmem>>, vector<1x256xbf16>
    %21 = vector.broadcast %20 : vector<1x256xbf16> to vector<128x256xbf16>
    %22 = arith.addf %19, %21 : vector<128x256xbf16>
    %cst_17 = arith.constant 0.000000e+00 : bf16
    %23 = vector.broadcast %cst_17 : bf16 to vector<128x256xbf16>
    %24 = arith.maximumf %22, %23 : vector<128x256xbf16>
    %c0_18 = arith.constant 0 : index
    %c0_19 = arith.constant 0 : index
    %25 = vector.load %arg8[%c0_18, %c0_19] : memref<256x128xbf16, #tpu.memory_space<vmem>>, vector<256x128xbf16>
    %cst_20 = arith.constant dense<0.000000e+00> : vector<128x128xf32>
    %26 = tpu.matmul %24, %25, %cst_20 {dimension_numbers = #tpu.dot_dimension_numbers<[1], [0], [0], [1], [0, 0, 1, 1], [], []>} : vector<128x256xbf16>, vector<256x128xbf16>, vector<128x128xf32> -> vector<128x128xf32>
    %27 = arith.truncf %26 : vector<128x128xf32> to vector<128x128xbf16>
    %c0_21 = arith.constant 0 : index
    %c0_22 = arith.constant 0 : index
    %28 = vector.load %arg9[%c0_21, %c0_22] : memref<1x128xbf16, #tpu.memory_space<vmem>>, vector<1x128xbf16>
    %29 = vector.broadcast %28 : vector<1x128xbf16> to vector<128x128xbf16>
    %30 = arith.addf %27, %29 : vector<128x128xbf16>
    %cst_23 = arith.constant 0.000000e+00 : bf16
    %31 = vector.broadcast %cst_23 : bf16 to vector<128x128xbf16>
    %32 = arith.maximumf %30, %31 : vector<128x128xbf16>
    %c0_24 = arith.constant 0 : index
    %c0_25 = arith.constant 0 : index
    %33 = vector.load %arg10[%c0_24, %c0_25] : memref<128x128xbf16, #tpu.memory_space<vmem>>, vector<128x128xbf16>
    %cst_26 = arith.constant dense<0.000000e+00> : vector<128x128xf32>
    %34 = tpu.matmul %32, %33, %cst_26 {dimension_numbers = #tpu.dot_dimension_numbers<[1], [0], [0], [1], [0, 0, 1, 1], [], []>} : vector<128x128xbf16>, vector<128x128xbf16>, vector<128x128xf32> -> vector<128x128xf32>
    %35 = arith.truncf %34 : vector<128x128xf32> to vector<128x128xbf16>
    %c0_27 = arith.constant 0 : index
    %c0_28 = arith.constant 0 : index
    %36 = vector.load %arg11[%c0_27, %c0_28] : memref<1x128xbf16, #tpu.memory_space<vmem>>, vector<1x128xbf16>
    %37 = vector.broadcast %36 : vector<1x128xbf16> to vector<128x128xbf16>
    %38 = arith.addf %35, %37 : vector<128x128xbf16>
    %cst_29 = arith.constant 0.000000e+00 : bf16
    %39 = vector.broadcast %cst_29 : bf16 to vector<128x128xbf16>
    %40 = arith.maximumf %38, %39 : vector<128x128xbf16>
    %c0_30 = arith.constant 0 : index
    %c0_31 = arith.constant 0 : index
    %41 = vector.load %arg12[%c0_30, %c0_31] : memref<128x128xbf16, #tpu.memory_space<vmem>>, vector<128x128xbf16>
    %cst_32 = arith.constant dense<0.000000e+00> : vector<128x128xf32>
    %42 = tpu.matmul %40, %41, %cst_32 {dimension_numbers = #tpu.dot_dimension_numbers<[1], [0], [0], [1], [0, 0, 1, 1], [], []>} : vector<128x128xbf16>, vector<128x128xbf16>, vector<128x128xf32> -> vector<128x128xf32>
    %43 = arith.truncf %42 : vector<128x128xf32> to vector<128x128xbf16>
    %c0_33 = arith.constant 0 : index
    %c0_34 = arith.constant 0 : index
    %44 = vector.load %arg13[%c0_33, %c0_34] : memref<1x128xbf16, #tpu.memory_space<vmem>>, vector<1x128xbf16>
    %45 = vector.broadcast %44 : vector<1x128xbf16> to vector<128x128xbf16>
    %46 = arith.addf %43, %45 : vector<128x128xbf16>
    %c0_35 = arith.constant 0 : index
    %c0_36 = arith.constant 0 : index
    %47 = vector.load %arg14[%c0_35, %c0_36] : memref<128x128xbf16, #tpu.memory_space<vmem>>, vector<128x128xbf16>
    tpu.vector_store %arg14[%c0_35, %c0_36], %46 {strides = array<i32>} : memref<128x128xbf16, #tpu.memory_space<vmem>>, vector<128x128xbf16>,
    return
  }
  func.func @transform_0(%arg0: i32) -> (i32, i32) {
    %c0_i32 = arith.constant 0 : i32
    %c0_i32_0 = arith.constant 0 : i32
    return %arg0, %c0_i32 : i32, i32
  }
  func.func @transform_1(%arg0: i32) -> (i32, i32) {
    %c0_i32 = arith.constant 0 : i32
    %c0_i32_0 = arith.constant 0 : i32
    %c0_i32_1 = arith.constant 0 : i32
    return %c0_i32, %c0_i32_0 : i32, i32
  }
  func.func @transform_2(%arg0: i32) -> (i32, i32) {
    %c0_i32 = arith.constant 0 : i32
    %c0_i32_0 = arith.constant 0 : i32
    %c0_i32_1 = arith.constant 0 : i32
    return %c0_i32, %c0_i32_0 : i32, i32
  }
  func.func @transform_3(%arg0: i32) -> (i32, i32) {
    %c0_i32 = arith.constant 0 : i32
    %c0_i32_0 = arith.constant 0 : i32
    %c0_i32_1 = arith.constant 0 : i32
    return %c0_i32, %c0_i32_0 : i32, i32
  }
  func.func @transform_4(%arg0: i32) -> (i32, i32) {
    %c0_i32 = arith.constant 0 : i32
    %c0_i32_0 = arith.constant 0 : i32
    %c0_i32_1 = arith.constant 0 : i32
    return %c0_i32, %c0_i32_0 : i32, i32
  }
  func.func @transform_5(%arg0: i32) -> (i32, i32) {
    %c0_i32 = arith.constant 0 : i32
    %c0_i32_0 = arith.constant 0 : i32
    %c0_i32_1 = arith.constant 0 : i32
    return %c0_i32, %c0_i32_0 : i32, i32
  }
  func.func @transform_6(%arg0: i32) -> (i32, i32) {
    %c0_i32 = arith.constant 0 : i32
    %c0_i32_0 = arith.constant 0 : i32
    %c0_i32_1 = arith.constant 0 : i32
    return %c0_i32, %c0_i32_0 : i32, i32
  }
  func.func @transform_7(%arg0: i32) -> (i32, i32) {
    %c0_i32 = arith.constant 0 : i32
    %c0_i32_0 = arith.constant 0 : i32
    %c0_i32_1 = arith.constant 0 : i32
    return %c0_i32, %c0_i32_0 : i32, i32
  }
  func.func @transform_8(%arg0: i32) -> (i32, i32) {
    %c0_i32 = arith.constant 0 : i32
    %c0_i32_0 = arith.constant 0 : i32
    %c0_i32_1 = arith.constant 0 : i32
    return %c0_i32, %c0_i32_0 : i32, i32
  }
  func.func @transform_9(%arg0: i32) -> (i32, i32) {
    %c0_i32 = arith.constant 0 : i32
    %c0_i32_0 = arith.constant 0 : i32
    %c0_i32_1 = arith.constant 0 : i32
    return %c0_i32, %c0_i32_0 : i32, i32
  }
  func.func @transform_10(%arg0: i32) -> (i32, i32) {
    %c0_i32 = arith.constant 0 : i32
    %c0_i32_0 = arith.constant 0 : i32
    %c0_i32_1 = arith.constant 0 : i32
    return %c0_i32, %c0_i32_0 : i32, i32
  }
  func.func @transform_11(%arg0: i32) -> (i32, i32) {
    %c0_i32 = arith.constant 0 : i32
    %c0_i32_0 = arith.constant 0 : i32
    %c0_i32_1 = arith.constant 0 : i32
    return %c0_i32, %c0_i32_0 : i32, i32
  }
  func.func @transform_12(%arg0: i32) -> (i32, i32) {
    %c0_i32 = arith.constant 0 : i32
    %c0_i32_0 = arith.constant 0 : i32
    %c0_i32_1 = arith.constant 0 : i32
    return %c0_i32, %c0_i32_0 : i32, i32
  }
  func.func @transform_13(%arg0: i32) -> (i32, i32) {
    %c0_i32 = arith.constant 0 : i32
    %c0_i32_0 = arith.constant 0 : i32
    return %arg0, %c0_i32 : i32, i32
  }
}

</mosaic_0001>

<llo_original>
// kernel: denser_nn_forward.1
$region0: #{denser_nn_forward.1}
  #allocation0 [shape = 'u32[]', space=smem, size = 0x4, offset = 0x4, fixed_abs, tag = 'smem constant byte address 0x4 - core index']
  #allocation1 [shape = 'u32[144,128]{1,0:T(1,128)}', space=vmem, size = 0x12000, scoped, tag = 'internal scratch']
  %s0 = inlined_call_operand.vmem [shape: bf16[256,32], index: 0, kind: input, shape index: {}]
  %s1 = inlined_call_operand.hbm [shape: bf16[32,256], index: 1, kind: input, shape index: {}]
  %s2 = inlined_call_operand.vmem [shape: bf16[1,256], index: 2, kind: input, shape index: {}]
  %s3 = inlined_call_operand.hbm [shape: bf16[256,512], index: 3, kind: input, shape index: {}]
  %s4 = inlined_call_operand.vmem [shape: bf16[1,512], index: 4, kind: input, shape index: {}]
  %s5 = inlined_call_operand.hbm [shape: bf16[512,256], index: 5, kind: input, shape index: {}]
  %s6 = inlined_call_operand.vmem [shape: bf16[1,256], index: 6, kind: input, shape index: {}]
  %s7 = inlined_call_operand.vmem [shape: bf16[256,128], index: 7, kind: input, shape index: {}]
  %s8 = inlined_call_operand.vmem [shape: bf16[1,128], index: 8, kind: input, shape index: {}]
  %s9 = inlined_call_operand.hbm [shape: bf16[128,128], index: 9, kind: input, shape index: {}]
  %s10 = inlined_call_operand.vmem [shape: bf16[1,128], index: 10, kind: input, shape index: {}]
  %s11 = inlined_call_operand.hbm [shape: bf16[128,128], index: 11, kind: input, shape index: {}]
  %s12 = inlined_call_operand.vmem [shape: bf16[1,128], index: 12, kind: input, shape index: {}]
  %s13 = inlined_call_operand.vmem [shape: bf16[256,128], index: 13, kind: output, shape index: {}]
  %s14 = sld [smem:[#allocation0]]
  $region105: #{denser_nn_forward.1} parent=0
    _
  %s16 = ssub.s32 1, %s14
  %s17 = scalar_select 0, %s16, %s14
  $region1: #{denser_nn_forward.1} parent=0
    #allocation2 [shape = 'u8[16384]{0}', space=vmem, size = 0x4000, scoped, tag = 'input window, operand 1, single buffered']
    #allocation3 [shape = 's32[2]{0}', space=sflag, size = 0x8, scoped, tag = 'scoped memory for denser_nn_forward.1']
    #allocation4 [shape = 'u8[262144]{0}', space=vmem, size = 0x40000, scoped, tag = 'input window, operand 3, single buffered']
    #allocation5 [shape = 's32[1]{0}', space=sflag, size = 0x4, scoped, tag = 'scoped memory for denser_nn_forward.1']
    #allocation6 [shape = 'u8[262144]{0}', space=vmem, size = 0x40000, scoped, tag = 'input window, operand 5, single buffered']
    #allocation7 [shape = 'u8[32768]{0}', space=vmem, size = 0x8000, scoped, tag = 'input window, operand 9, single buffered']
    #allocation8 [shape = 's32[1]{0}', space=sflag, size = 0x4, scoped, tag = 'scoped memory for denser_nn_forward.1']
    #allocation9 [shape = 'u8[32768]{0}', space=vmem, size = 0x8000, scoped, tag = 'input window, operand 11, single buffered']
    %18 = vsyncpa [#allocation3], 0
    %19 = vsyncpa [#allocation5], 0
    %20 = vsyncpa [#allocation8], 0
    loop: start=0, step=1, limit=4
    $region2: #{denser_nn_forward.1} parent=1 // loop_pre_header
      _
    $region3: #{denser_nn_forward.1} parent=1 // loop_header
      %s22 = sphi 0, %s26
      %p23 = scmp.ge.s32.totalorder %s22, 4
      %s32 = sphi 0, %s34
      %s35 = sphi 0, %s32
      %s36 = sphi 0, %s35
      %s52 = sphi 0, %s36
      %s56 = sphi 0, %s56
      %s58 = sphi 0, %s56
      %s59 = sphi 0, %s58
      %s73 = sphi 0, %s59
      %s77 = sphi 0, %s77
      %s79 = sphi 0, %s77
      %s80 = sphi 0, %s79
      %s94 = sphi 0, %s80
      %s98 = sphi 0, %s98
      %s100 = sphi 0, %s98
      %s101 = sphi 0, %s100
      %s115 = sphi 0, %s101
      %s119 = sphi 0, %s119
      %s121 = sphi 0, %s119
      %s122 = sphi 0, %s121
      %s136 = sphi 0, %s122
      %s140 = sphi 0, %s140
      %s142 = sphi 0, %s140
      %s143 = sphi 0, %s142
      %s157 = sphi 0, %s143
      %s161 = sphi 0, %s161
      %s163 = sphi 0, %s161
      %s164 = sphi 0, %s163
      %s178 = sphi 0, %s164
      %s182 = sphi 0, %s182
      %s184 = sphi 0, %s182
      %s185 = sphi 0, %s184
      %s199 = sphi 0, %s185
      %s203 = sphi 0, %s203
      %s205 = sphi 0, %s203
      %s206 = sphi 0, %s205
      %s220 = sphi 0, %s206
      %s224 = sphi 0, %s224
      %s226 = sphi 0, %s224
      %s227 = sphi 0, %s226
      %s241 = sphi 0, %s227
      %s245 = sphi 0, %s245
      %s247 = sphi 0, %s245
      %s248 = sphi 0, %s247
      %s262 = sphi 0, %s248
      %s266 = sphi 0, %s266
      %s268 = sphi 0, %s266
      %s269 = sphi 0, %s268
      %s283 = sphi 0, %s269
      %s287 = sphi 0, %s287
      %s289 = sphi 0, %s287
      %s290 = sphi 0, %s289
      %s304 = sphi 0, %s290
      %s310 = sphi 0, %s312
      %s313 = sphi 0, %s310
      %s314 = sphi 0, %s313
      %s330 = sphi 0, %s314
    $region4: #{denser_nn_forward.1} parent=1 // loop_header_branch
      %25 = sbr.rel (%p23) target = $region8
    $region5: #{denser_nn_forward.1} parent=1 // loop_body
      %s27 = ssub.s32 %s22, 1
      %s28 = ssub.s32 %s22, 2
      %s29 = sadd.s32 %s22, 1
      %s30 = ssub.s32 %s22, %s29
      %p31 = scmp.eq.s32.totalorder %s30, 0
      %s33 = sadd.s32 %s32, 1
      %s34 = scalar_select %p31, %s32, %s33
      %p37 = pneg %p31
      %p38 = scmp.eq.s32.totalorder %s22, 1
      %p39 = por %p37, %p38
      %p40 = scmp.ne.s32.totalorder %s32, %s35
      %p41 = scmp.eq.s32.totalorder %s22, 0
      %p42 = por %p40, %p41
      %p43 = scmp.ne.s32.totalorder %s32, %s35
      %p44 = scmp.eq.s32.totalorder %s27, 1
      %p45 = por %p43, %p44
      %p46 = scmp.ne.s32.totalorder %s35, %s36
      %p47 = scmp.eq.s32.totalorder %s27, 0
      %p48 = por %p46, %p47
      %p49 = scmp.ne.s32.totalorder %s35, %s36
      %p50 = scmp.eq.s32.totalorder %s28, 1
      %p51 = por %p49, %p50
      %p53 = scmp.ne.s32.totalorder %s36, %s52
      %p54 = scmp.eq.s32.totalorder %s28, 0
      %p55 = por %p53, %p54
      %s57 = sadd.s32 %s56, 1
      %p60 = scmp.eq.s32.totalorder %s22, 1
      %p61 = scmp.ne.s32.totalorder %s56, %s58
      %p62 = scmp.eq.s32.totalorder %s22, 0
      %p63 = por %p61, %p62
      %p64 = scmp.ne.s32.totalorder %s56, %s58
      %p65 = scmp.eq.s32.totalorder %s27, 1
      %p66 = por %p64, %p65
      %p67 = scmp.ne.s32.totalorder %s58, %s59
      %p68 = scmp.eq.s32.totalorder %s27, 0
      %p69 = por %p67, %p68
      %p70 = scmp.ne.s32.totalorder %s58, %s59
      %p71 = scmp.eq.s32.totalorder %s28, 1
      %p72 = por %p70, %p71
      %p74 = scmp.ne.s32.totalorder %s59, %s73
      %p75 = scmp.eq.s32.totalorder %s28, 0
      %p76 = por %p74, %p75
      %s78 = sadd.s32 %s77, 1
      %p81 = scmp.eq.s32.totalorder %s22, 1
      %p82 = scmp.ne.s32.totalorder %s77, %s79
      %p83 = scmp.eq.s32.totalorder %s22, 0
      %p84 = por %p82, %p83
      %p85 = scmp.ne.s32.totalorder %s77, %s79
      %p86 = scmp.eq.s32.totalorder %s27, 1
      %p87 = por %p85, %p86
      %p88 = scmp.ne.s32.totalorder %s79, %s80
      %p89 = scmp.eq.s32.totalorder %s27, 0
      %p90 = por %p88, %p89
      %p91 = scmp.ne.s32.totalorder %s79, %s80
      %p92 = scmp.eq.s32.totalorder %s28, 1
      %p93 = por %p91, %p92
      %p95 = scmp.ne.s32.totalorder %s80, %s94
      %p96 = scmp.eq.s32.totalorder %s28, 0
      %p97 = por %p95, %p96
      %s99 = sadd.s32 %s98, 1
      %p102 = scmp.eq.s32.totalorder %s22, 1
      %p103 = scmp.ne.s32.totalorder %s98, %s100
      %p104 = scmp.eq.s32.totalorder %s22, 0
      %p105 = por %p103, %p104
      %p106 = scmp.ne.s32.totalorder %s98, %s100
      %p107 = scmp.eq.s32.totalorder %s27, 1
      %p108 = por %p106, %p107
      %p109 = scmp.ne.s32.totalorder %s100, %s101
      %p110 = scmp.eq.s32.totalorder %s27, 0
      %p111 = por %p109, %p110
      %p112 = scmp.ne.s32.totalorder %s100, %s101
      %p113 = scmp.eq.s32.totalorder %s28, 1
      %p114 = por %p112, %p113
      %p116 = scmp.ne.s32.totalorder %s101, %s115
      %p117 = scmp.eq.s32.totalorder %s28, 0
      %p118 = por %p116, %p117
      %s120 = sadd.s32 %s119, 1
      %p123 = scmp.eq.s32.totalorder %s22, 1
      %p124 = scmp.ne.s32.totalorder %s119, %s121
      %p125 = scmp.eq.s32.totalorder %s22, 0
      %p126 = por %p124, %p125
      %p127 = scmp.ne.s32.totalorder %s119, %s121
      %p128 = scmp.eq.s32.totalorder %s27, 1
      %p129 = por %p127, %p128
      %p130 = scmp.ne.s32.totalorder %s121, %s122
      %p131 = scmp.eq.s32.totalorder %s27, 0
      %p132 = por %p130, %p131
      %p133 = scmp.ne.s32.totalorder %s121, %s122
      %p134 = scmp.eq.s32.totalorder %s28, 1
      %p135 = por %p133, %p134
      %p137 = scmp.ne.s32.totalorder %s122, %s136
      %p138 = scmp.eq.s32.totalorder %s28, 0
      %p139 = por %p137, %p138
      %s141 = sadd.s32 %s140, 1
      %p144 = scmp.eq.s32.totalorder %s22, 1
      %p145 = scmp.ne.s32.totalorder %s140, %s142
      %p146 = scmp.eq.s32.totalorder %s22, 0
      %p147 = por %p145, %p146
      %p148 = scmp.ne.s32.totalorder %s140, %s142
      %p149 = scmp.eq.s32.totalorder %s27, 1
      %p150 = por %p148, %p149
      %p151 = scmp.ne.s32.totalorder %s142, %s143
      %p152 = scmp.eq.s32.totalorder %s27, 0
      %p153 = por %p151, %p152
      %p154 = scmp.ne.s32.totalorder %s142, %s143
      %p155 = scmp.eq.s32.totalorder %s28, 1
      %p156 = por %p154, %p155
      %p158 = scmp.ne.s32.totalorder %s143, %s157
      %p159 = scmp.eq.s32.totalorder %s28, 0
      %p160 = por %p158, %p159
      %s162 = sadd.s32 %s161, 1
      %p165 = scmp.eq.s32.totalorder %s22, 1
      %p166 = scmp.ne.s32.totalorder %s161, %s163
      %p167 = scmp.eq.s32.totalorder %s22, 0
      %p168 = por %p166, %p167
      %p169 = scmp.ne.s32.totalorder %s161, %s163
      %p170 = scmp.eq.s32.totalorder %s27, 1
      %p171 = por %p169, %p170
      %p172 = scmp.ne.s32.totalorder %s163, %s164
      %p173 = scmp.eq.s32.totalorder %s27, 0
      %p174 = por %p172, %p173
      %p175 = scmp.ne.s32.totalorder %s163, %s164
      %p176 = scmp.eq.s32.totalorder %s28, 1
      %p177 = por %p175, %p176
      %p179 = scmp.ne.s32.totalorder %s164, %s178
      %p180 = scmp.eq.s32.totalorder %s28, 0
      %p181 = por %p179, %p180
      %s183 = sadd.s32 %s182, 1
      %p186 = scmp.eq.s32.totalorder %s22, 1
      %p187 = scmp.ne.s32.totalorder %s182, %s184
      %p188 = scmp.eq.s32.totalorder %s22, 0
      %p189 = por %p187, %p188
      %p190 = scmp.ne.s32.totalorder %s182, %s184
      %p191 = scmp.eq.s32.totalorder %s27, 1
      %p192 = por %p190, %p191
      %p193 = scmp.ne.s32.totalorder %s184, %s185
      %p194 = scmp.eq.s32.totalorder %s27, 0
      %p195 = por %p193, %p194
      %p196 = scmp.ne.s32.totalorder %s184, %s185
      %p197 = scmp.eq.s32.totalorder %s28, 1
      %p198 = por %p196, %p197
      %p200 = scmp.ne.s32.totalorder %s185, %s199
      %p201 = scmp.eq.s32.totalorder %s28, 0
      %p202 = por %p200, %p201
      %s204 = sadd.s32 %s203, 1
      %p207 = scmp.eq.s32.totalorder %s22, 1
      %p208 = scmp.ne.s32.totalorder %s203, %s205
      %p209 = scmp.eq.s32.totalorder %s22, 0
      %p210 = por %p208, %p209
      %p211 = scmp.ne.s32.totalorder %s203, %s205
      %p212 = scmp.eq.s32.totalorder %s27, 1
      %p213 = por %p211, %p212
      %p214 = scmp.ne.s32.totalorder %s205, %s206
      %p215 = scmp.eq.s32.totalorder %s27, 0
      %p216 = por %p214, %p215
      %p217 = scmp.ne.s32.totalorder %s205, %s206
      %p218 = scmp.eq.s32.totalorder %s28, 1
      %p219 = por %p217, %p218
      %p221 = scmp.ne.s32.totalorder %s206, %s220
      %p222 = scmp.eq.s32.totalorder %s28, 0
      %p223 = por %p221, %p222
      %s225 = sadd.s32 %s224, 1
      %p228 = scmp.eq.s32.totalorder %s22, 1
      %p229 = scmp.ne.s32.totalorder %s224, %s226
      %p230 = scmp.eq.s32.totalorder %s22, 0
      %p231 = por %p229, %p230
      %p232 = scmp.ne.s32.totalorder %s224, %s226
      %p233 = scmp.eq.s32.totalorder %s27, 1
      %p234 = por %p232, %p233
      %p235 = scmp.ne.s32.totalorder %s226, %s227
      %p236 = scmp.eq.s32.totalorder %s27, 0
      %p237 = por %p235, %p236
      %p238 = scmp.ne.s32.totalorder %s226, %s227
      %p239 = scmp.eq.s32.totalorder %s28, 1
      %p240 = por %p238, %p239
      %p242 = scmp.ne.s32.totalorder %s227, %s241
      %p243 = scmp.eq.s32.totalorder %s28, 0
      %p244 = por %p242, %p243
      %s246 = sadd.s32 %s245, 1
      %p249 = scmp.eq.s32.totalorder %s22, 1
      %p250 = scmp.ne.s32.totalorder %s245, %s247
      %p251 = scmp.eq.s32.totalorder %s22, 0
      %p252 = por %p250, %p251
      %p253 = scmp.ne.s32.totalorder %s245, %s247
      %p254 = scmp.eq.s32.totalorder %s27, 1
      %p255 = por %p253, %p254
      %p256 = scmp.ne.s32.totalorder %s247, %s248
      %p257 = scmp.eq.s32.totalorder %s27, 0
      %p258 = por %p256, %p257
      %p259 = scmp.ne.s32.totalorder %s247, %s248
      %p260 = scmp.eq.s32.totalorder %s28, 1
      %p261 = por %p259, %p260
      %p263 = scmp.ne.s32.totalorder %s248, %s262
      %p264 = scmp.eq.s32.totalorder %s28, 0
      %p265 = por %p263, %p264
      %s267 = sadd.s32 %s266, 1
      %p270 = scmp.eq.s32.totalorder %s22, 1
      %p271 = scmp.ne.s32.totalorder %s266, %s268
      %p272 = scmp.eq.s32.totalorder %s22, 0
      %p273 = por %p271, %p272
      %p274 = scmp.ne.s32.totalorder %s266, %s268
      %p275 = scmp.eq.s32.totalorder %s27, 1
      %p276 = por %p274, %p275
      %p277 = scmp.ne.s32.totalorder %s268, %s269
      %p278 = scmp.eq.s32.totalorder %s27, 0
      %p279 = por %p277, %p278
      %p280 = scmp.ne.s32.totalorder %s268, %s269
      %p281 = scmp.eq.s32.totalorder %s28, 1
      %p282 = por %p280, %p281
      %p284 = scmp.ne.s32.totalorder %s269, %s283
      %p285 = scmp.eq.s32.totalorder %s28, 0
      %p286 = por %p284, %p285
      %s288 = sadd.s32 %s287, 1
      %p291 = scmp.eq.s32.totalorder %s22, 1
      %p292 = scmp.ne.s32.totalorder %s287, %s289
      %p293 = scmp.eq.s32.totalorder %s22, 0
      %p294 = por %p292, %p293
      %p295 = scmp.ne.s32.totalorder %s287, %s289
      %p296 = scmp.eq.s32.totalorder %s27, 1
      %p297 = por %p295, %p296
      %p298 = scmp.ne.s32.totalorder %s289, %s290
      %p299 = scmp.eq.s32.totalorder %s27, 0
      %p300 = por %p298, %p299
      %p301 = scmp.ne.s32.totalorder %s289, %s290
      %p302 = scmp.eq.s32.totalorder %s28, 1
      %p303 = por %p301, %p302
      %p305 = scmp.ne.s32.totalorder %s290, %s304
      %p306 = scmp.eq.s32.totalorder %s28, 0
      %p307 = por %p305, %p306
      %s308 = ssub.s32 %s22, %s29
      %p309 = scmp.eq.s32.totalorder %s308, 0
      %s311 = sadd.s32 %s310, 1
      %s312 = scalar_select %p309, %s310, %s311
      %p315 = pneg %p309
      %p316 = scmp.eq.s32.totalorder %s22, 1
      %p317 = por %p315, %p316
      %p318 = scmp.ne.s32.totalorder %s310, %s313
      %p319 = scmp.eq.s32.totalorder %s22, 0
      %p320 = por %p318, %p319
      %p321 = scmp.ne.s32.totalorder %s310, %s313
      %p322 = scmp.eq.s32.totalorder %s27, 1
      %p323 = por %p321, %p322
      %p324 = scmp.ne.s32.totalorder %s313, %s314
      %p325 = scmp.eq.s32.totalorder %s27, 0
      %p326 = por %p324, %p325
      %p327 = scmp.ne.s32.totalorder %s313, %s314
      %p328 = scmp.eq.s32.totalorder %s28, 1
      %p329 = por %p327, %p328
      %p331 = scmp.ne.s32.totalorder %s314, %s330
      %p332 = scmp.eq.s32.totalorder %s28, 0
      %p333 = por %p331, %p332
      %p334 = scmp.le.s32.totalorder 1, %s22
      %p335 = scmp.lt.s32.totalorder %s22, 3
      %p336 = pnand %p334, %p335
      %p337 = pneg %p336
      // Predicated region
      $region9: #{denser_nn_forward.1} parent=5 // pred_check
        _
      $region10: #{denser_nn_forward.1} parent=5 // pred_check_branch
        %339 = sbr.rel (%p336) target = $region12
      $region11: #{denser_nn_forward.1} parent=5 // pred_region
        %s340 = ssub.s32 %s22, 1
        // Predicated region
        $region13: #{denser_nn_forward.1} parent=11 // pred_check
          %p341 = pneg %p69
        $region14: #{denser_nn_forward.1} parent=11 // pred_check_branch
          %343 = sbr.rel (%p341) target = $region16
        $region15: #{denser_nn_forward.1} parent=11 // pred_region
          %s345 = ssub.s32 512, 512
          %346 = vsyncadd [#allocation3], %s345
          %s347 = sshll.u32 [#allocation2], 4
          %s348 = int_to_ptr.vmem [resolvable:$true] %s347
          %353 = dma.hbm_to_vmem [thread:$0]  %s1, 512, %s348, [#allocation3], 128, 128, 8
        $region16: #{denser_nn_forward.1} parent=11 // pred_fallthru
          _
        // Predicated region
        $region17: #{denser_nn_forward.1} parent=11 // pred_check
          %p354 = pneg %p90
        $region18: #{denser_nn_forward.1} parent=11 // pred_check_branch
          %356 = sbr.rel (%p354) target = $region20
        $region19: #{denser_nn_forward.1} parent=11 // pred_region
          _
        $region20: #{denser_nn_forward.1} parent=11 // pred_fallthru
          _
        // Predicated region
        $region21: #{denser_nn_forward.1} parent=11 // pred_check
          %p357 = pneg %p111
        $region22: #{denser_nn_forward.1} parent=11 // pred_check_branch
          %359 = sbr.rel (%p357) target = $region24
        $region23: #{denser_nn_forward.1} parent=11 // pred_region
          %s361 = ssub.s32 8192, 8192
          %362 = vsyncadd [#allocation5], %s361
          %s363 = sshll.u32 [#allocation4], 4
          %s364 = int_to_ptr.vmem [resolvable:$true] %s363
          %369 = dma.hbm_to_vmem [thread:$0]  %s3, 8192, %s364, [#allocation5], 256, 256, 16
        $region24: #{denser_nn_forward.1} parent=11 // pred_fallthru
          _
        // Predicated region
        $region25: #{denser_nn_forward.1} parent=11 // pred_check
          %p370 = pneg %p132
        $region26: #{denser_nn_forward.1} parent=11 // pred_check_branch
          %372 = sbr.rel (%p370) target = $region28
        $region27: #{denser_nn_forward.1} parent=11 // pred_region
          _
        $region28: #{denser_nn_forward.1} parent=11 // pred_fallthru
          _
        // Predicated region
        $region29: #{denser_nn_forward.1} parent=11 // pred_check
          %p373 = pneg %p153
        $region30: #{denser_nn_forward.1} parent=11 // pred_check_branch
          %375 = sbr.rel (%p373) target = $region32
        $region31: #{denser_nn_forward.1} parent=11 // pred_region
          %s377 = ssub.s32 8192, 8192
          %378 = vsyncadd [#allocation5], %s377
          %s379 = sshll.u32 [#allocation6], 4
          %s380 = int_to_ptr.vmem [resolvable:$true] %s379
          %385 = dma.hbm_to_vmem [thread:$0]  %s5, 8192, %s380, [#allocation5], 128, 128, 8
        $region32: #{denser_nn_forward.1} parent=11 // pred_fallthru
          _
        // Predicated region
        $region33: #{denser_nn_forward.1} parent=11 // pred_check
          %p386 = pneg %p174
        $region34: #{denser_nn_forward.1} parent=11 // pred_check_branch
          %388 = sbr.rel (%p386) target = $region36
        $region35: #{denser_nn_forward.1} parent=11 // pred_region
          _
        $region36: #{denser_nn_forward.1} parent=11 // pred_fallthru
          _
        // Predicated region
        $region37: #{denser_nn_forward.1} parent=11 // pred_check
          %p389 = pneg %p195
        $region38: #{denser_nn_forward.1} parent=11 // pred_check_branch
          %391 = sbr.rel (%p389) target = $region40
        $region39: #{denser_nn_forward.1} parent=11 // pred_region
          _
        $region40: #{denser_nn_forward.1} parent=11 // pred_fallthru
          _
        // Predicated region
        $region41: #{denser_nn_forward.1} parent=11 // pred_check
          %p392 = pneg %p216
        $region42: #{denser_nn_forward.1} parent=11 // pred_check_branch
          %394 = sbr.rel (%p392) target = $region44
        $region43: #{denser_nn_forward.1} parent=11 // pred_region
          _
        $region44: #{denser_nn_forward.1} parent=11 // pred_fallthru
          _
        // Predicated region
        $region45: #{denser_nn_forward.1} parent=11 // pred_check
          %p395 = pneg %p237
        $region46: #{denser_nn_forward.1} parent=11 // pred_check_branch
          %397 = sbr.rel (%p395) target = $region48
        $region47: #{denser_nn_forward.1} parent=11 // pred_region
          %s399 = ssub.s32 1024, 1024
          %400 = vsyncadd [#allocation8], %s399
          %s401 = sshll.u32 [#allocation7], 4
          %s402 = int_to_ptr.vmem [resolvable:$true] %s401
          %407 = dma.hbm_to_vmem [thread:$0]  %s9, 1024, %s402, [#allocation8], 64, 64, 4
        $region48: #{denser_nn_forward.1} parent=11 // pred_fallthru
          _
        // Predicated region
        $region49: #{denser_nn_forward.1} parent=11 // pred_check
          %p408 = pneg %p258
        $region50: #{denser_nn_forward.1} parent=11 // pred_check_branch
          %410 = sbr.rel (%p408) target = $region52
        $region51: #{denser_nn_forward.1} parent=11 // pred_region
          _
        $region52: #{denser_nn_forward.1} parent=11 // pred_fallthru
          _
        // Predicated region
        $region53: #{denser_nn_forward.1} parent=11 // pred_check
          %p411 = pneg %p279
        $region54: #{denser_nn_forward.1} parent=11 // pred_check_branch
          %413 = sbr.rel (%p411) target = $region56
        $region55: #{denser_nn_forward.1} parent=11 // pred_region
          %s415 = ssub.s32 1024, 1024
          %416 = vsyncadd [#allocation8], %s415
          %s417 = sshll.u32 [#allocation9], 4
          %s418 = int_to_ptr.vmem [resolvable:$true] %s417
          %423 = dma.hbm_to_vmem [thread:$0]  %s11, 1024, %s418, [#allocation8], 64, 64, 4
        $region56: #{denser_nn_forward.1} parent=11 // pred_fallthru
          _
        // Predicated region
        $region57: #{denser_nn_forward.1} parent=11 // pred_check
          %p424 = pneg %p300
        $region58: #{denser_nn_forward.1} parent=11 // pred_check_branch
          %426 = sbr.rel (%p424) target = $region60
        $region59: #{denser_nn_forward.1} parent=11 // pred_region
          _
        $region60: #{denser_nn_forward.1} parent=11 // pred_fallthru
          _
      $region12: #{denser_nn_forward.1} parent=5 // pred_fallthru
        _
      %p427 = scmp.lt.s32.totalorder %s22, 2
      // Predicated region
      $region61: #{denser_nn_forward.1} parent=5 // pred_check
        %p428 = pneg %p427
      $region62: #{denser_nn_forward.1} parent=5 // pred_check_branch
        %430 = sbr.rel (%p428) target = $region64
      $region63: #{denser_nn_forward.1} parent=5 // pred_region
        // Predicated region
        $region65: #{denser_nn_forward.1} parent=63 // pred_check
          %p431 = pneg %p42
        $region66: #{denser_nn_forward.1} parent=63 // pred_check_branch
          %433 = sbr.rel (%p431) target = $region68
        $region67: #{denser_nn_forward.1} parent=63 // pred_region
          %s434 = smul.u32 16, %s22
          %p435 = scmp.lt.s32.totalorder %s434, 31
          %s436 = scalar_select %p435, %s434, 31
          %s437 = smul.addr %s436, 4
          %s438 = scalar_lea.vmem %s0, %s437
          %s439 = smul.u32 16, %s22
        $region68: #{denser_nn_forward.1} parent=63 // pred_fallthru
          _
      $region64: #{denser_nn_forward.1} parent=5 // pred_fallthru
        _
      %p440 = scmp.le.s32.totalorder 1, %s22
      %p441 = scmp.lt.s32.totalorder %s22, 3
      %p442 = pnand %p440, %p441
      %p443 = pneg %p442
      // Predicated region
      $region69: #{denser_nn_forward.1} parent=5 // pred_check
        _
      $region70: #{denser_nn_forward.1} parent=5 // pred_check_branch
        %445 = sbr.rel (%p442) target = $region72
      $region71: #{denser_nn_forward.1} parent=5 // pred_region
        %s446 = ssub.s32 %s22, 1
        // Predicated region
        $region73: #{denser_nn_forward.1} parent=71 // pred_check
          %p447 = pneg %p69
        $region74: #{denser_nn_forward.1} parent=71 // pred_check_branch
          %449 = sbr.rel (%p447) target = $region76
        $region75: #{denser_nn_forward.1} parent=71 // pred_region
          %450 = dma.done [#allocation3], 512
        $region76: #{denser_nn_forward.1} parent=71 // pred_fallthru
          _
        // Predicated region
        $region77: #{denser_nn_forward.1} parent=71 // pred_check
          %p451 = pneg %p111
        $region78: #{denser_nn_forward.1} parent=71 // pred_check_branch
          %453 = sbr.rel (%p451) target = $region80
        $region79: #{denser_nn_forward.1} parent=71 // pred_region
          %454 = dma.done [#allocation5], 8192
        $region80: #{denser_nn_forward.1} parent=71 // pred_fallthru
          _
        // Predicated region
        $region81: #{denser_nn_forward.1} parent=71 // pred_check
          %p455 = pneg %p153
        $region82: #{denser_nn_forward.1} parent=71 // pred_check_branch
          %457 = sbr.rel (%p455) target = $region84
        $region83: #{denser_nn_forward.1} parent=71 // pred_region
          %458 = dma.done [#allocation5], 8192
        $region84: #{denser_nn_forward.1} parent=71 // pred_fallthru
          _
        // Predicated region
        $region85: #{denser_nn_forward.1} parent=71 // pred_check
          %p459 = pneg %p237
        $region86: #{denser_nn_forward.1} parent=71 // pred_check_branch
          %461 = sbr.rel (%p459) target = $region88
        $region87: #{denser_nn_forward.1} parent=71 // pred_region
          %462 = dma.done [#allocation8], 1024
        $region88: #{denser_nn_forward.1} parent=71 // pred_fallthru
          _
        // Predicated region
        $region89: #{denser_nn_forward.1} parent=71 // pred_check
          %p463 = pneg %p279
        $region90: #{denser_nn_forward.1} parent=71 // pred_check_branch
          %465 = sbr.rel (%p463) target = $region92
        $region91: #{denser_nn_forward.1} parent=71 // pred_region
          %466 = dma.done [#allocation8], 1024
        $region92: #{denser_nn_forward.1} parent=71 // pred_fallthru
          _
        %s467 = smul.u32 16, %s27
        %p468 = scmp.lt.s32.totalorder %s467, 31
        %s469 = scalar_select %p468, %s467, 31
        %s470 = smul.addr %s469, 4
        %s471 = scalar_lea.vmem %s0, %s470
        %p472 = pneg %p48
        %p473 = pneg %p45
        %p474 = pneg %p69
        %p475 = pneg %p66
        %p476 = pneg %p90
        %p477 = pneg %p87
        %p478 = pneg %p111
        %p479 = pneg %p108
        %p480 = pneg %p132
        %p481 = pneg %p129
        %p482 = pneg %p153
        %p483 = pneg %p150
        %p484 = pneg %p174
        %p485 = pneg %p171
        %p486 = pneg %p195
        %p487 = pneg %p192
        %p488 = pneg %p216
        %p489 = pneg %p213
        %p490 = pneg %p237
        %p491 = pneg %p234
        %p492 = pneg %p258
        %p493 = pneg %p255
        %p494 = pneg %p279
        %p495 = pneg %p276
        %p496 = pneg %p300
        %p497 = pneg %p297
        %p498 = pneg %p326
        %p499 = pneg %p323
        %s500 = smul.u32 16, %s27
        %p501 = scmp.lt.s32.totalorder %s500, 31
        %s502 = scalar_select %p501, %s500, 31
        %s503 = smul.addr %s502, 4
        %s504 = scalar_lea.vmem %s13, %s503
        %s505 = smul.u32 16, %s27
        %p506 = scmp.lt.s32.totalorder %s505, 31
        %s507 = scalar_select %p506, %s505, 31
        %s508 = smul.addr %s507, 4
        %s509 = scalar_lea.vmem %s0, %s508
        %s510 = smul.u32 16, %s27
        %s511 = smul.u32 16, %s27
        %p512 = scmp.lt.s32.totalorder %s511, 31
        %s513 = scalar_select %p512, %s511, 31
        %s514 = smul.addr %s513, 4
        %s515 = scalar_lea.vmem %s13, %s514
        %s516 = smul.u32 16, %s27
        %v518 = vld [vmem:[%s509] sm:$0xf]
        %v519 = vld [vmem:[%s509 + $0x4] sm:$0xf]
        %v520 = vld [vmem:[%s509 + $0x8] sm:$0xf]
        %v521 = vld [vmem:[%s509 + $0xc] sm:$0xf]
        %v522 = vld [vmem:[%s509 + $0x10] sm:$0xf]
        %v523 = vld [vmem:[%s509 + $0x14] sm:$0xf]
        %v524 = vld [vmem:[%s509 + $0x18] sm:$0xf]
        %v525 = vld [vmem:[%s509 + $0x1c] sm:$0xf]
        %v526 = vld [vmem:[%s509 + $0x20] sm:$0xf]
        %v527 = vld [vmem:[%s509 + $0x24] sm:$0xf]
        %v528 = vld [vmem:[%s509 + $0x28] sm:$0xf]
        %v529 = vld [vmem:[%s509 + $0x2c] sm:$0xf]
        %v530 = vld [vmem:[%s509 + $0x30] sm:$0xf]
        %v531 = vld [vmem:[%s509 + $0x34] sm:$0xf]
        %v532 = vld [vmem:[%s509 + $0x38] sm:$0xf]
        %v533 = vld [vmem:[%s509 + $0x3c] sm:$0xf]
        %v534 = vld [vmem:[#allocation2] sm:$0xff]
        %v535 = vld [vmem:[#allocation2 + $0x8] sm:$0xff]
        %v536 = vld [vmem:[#allocation2 + $0x10] sm:$0xff]
        %v537 = vld [vmem:[#allocation2 + $0x18] sm:$0xff]
        %v554 = vunpack.c.l.b16 %v518
        %v555 = vunpack.c.l.b16 %v519
        %v556 = vunpack.c.l.b16 %v520
        %v557 = vunpack.c.l.b16 %v521
        %v558 = vunpack.c.l.b16 %v522
        %v559 = vunpack.c.l.b16 %v523
        %v560 = vunpack.c.l.b16 %v524
        %v561 = vunpack.c.l.b16 %v525
        %v562 = vunpack.c.l.b16 %v526
        %v563 = vunpack.c.l.b16 %v527
        %v564 = vunpack.c.l.b16 %v528
        %v565 = vunpack.c.l.b16 %v529
        %v566 = vunpack.c.l.b16 %v530
        %v567 = vunpack.c.l.b16 %v531
        %v568 = vunpack.c.l.b16 %v532
        %v569 = vunpack.c.l.b16 %v533
        %v570 = vpack.c.b16 %v555, %v554
        %v571 = vpack.c.b16 %v557, %v556
        %v572 = vpack.c.b16 %v559, %v558
        %v573 = vpack.c.b16 %v561, %v560
        %v574 = vpack.c.b16 %v563, %v562
        %v575 = vpack.c.b16 %v565, %v564
        %v576 = vpack.c.b16 %v567, %v566
        %v577 = vpack.c.b16 %v569, %v568
        %v582 = vunpack.c.l.b16 %v534
        %v583 = vunpack.c.h.b16 %v534
        %v584 = vunpack.c.l.b16 %v535
        %v585 = vunpack.c.h.b16 %v535
        %v586 = vunpack.c.l.b16 %v536
        %v587 = vunpack.c.h.b16 %v536
        %v588 = vunpack.c.l.b16 %v537
        %v589 = vunpack.c.h.b16 %v537
        %v590 = vpack.c.b16 %v584, %v582
        %v591 = vpack.c.b16 %v585, %v583
        %v592 = vpack.c.b16 %v588, %v586
        %v593 = vpack.c.b16 %v589, %v587
        %vm598 = vcmask 261120
        %v600 = vsel %vm598, %v570, 0
        %v603 = vsel %vm598, %v571, 0
        %v606 = vsel %vm598, %v572, 0
        %v609 = vsel %vm598, %v573, 0
        %v612 = vsel %vm598, %v574, 0
        %v615 = vsel %vm598, %v575, 0
        %v618 = vsel %vm598, %v576, 0
        %v621 = vsel %vm598, %v577, 0
        %623 = vmatprep.subr.bf16.mxu0 0
        %624 = vmatpush1.bf16.msra.mxu0 0
        %625 = vmatprep.subr.bf16.mxu0 0
        %626 = vmatpush1.bf16.msra.mxu0 0
        %627 = vmatprep.subr.bf16.mxu0 0
        %628 = vmatpush1.bf16.msra.mxu0 0
        %629 = vmatprep.subr.bf16.mxu0 0
        %630 = vmatpush1.bf16.msra.mxu0 0
        %631 = vmatprep.subr.bf16.mxu0 0
        %632 = vmatpush1.bf16.msra.mxu0 0
        %633 = vmatprep.subr.bf16.mxu0 0
        %634 = vmatpush1.bf16.msra.mxu0 0
        %635 = vmatprep.subr.bf16.mxu0 %v593
        %636 = vmatpush1.bf16.msra.mxu0 %v592
        %637 = vmatprep.subr.bf16.mxu0 %v591
        %638 = vmatpush1.bf16.msra.mxu0 %v590
        %639 = vmatprep.subr.bf16.mxu0 0
        %640 = vmatpush2.bf16.msra.mxu0 0
        %641 = vmatprep.subr.bf16.mxu0 0
        %642 = vmatpush2.bf16.msra.mxu0 0
        %643 = vmatprep.subr.bf16.mxu0 0
        %644 = vmatpush2.bf16.msra.mxu0 0
        %645 = vmatprep.subr.bf16.mxu0 0
        %646 = vmatpush2.bf16.msra.mxu0 0
        %647 = vmatprep.subr.bf16.mxu0 0
        %648 = vmatpush2.bf16.msra.mxu0 0
        %649 = vmatprep.subr.bf16.mxu0 0
        %650 = vmatpush2.bf16.msra.mxu0 0
        %651 = vmatprep.subr.bf16.mxu0 0
        %652 = vmatpush2.bf16.msra.mxu0 0
        %653 = vmatprep.subr.bf16.mxu0 0
        %654 = vmatpush2.bf16.msra.mxu0 0
        %655 = vmatprep.mubr.bf16.mxu0 0
        %656 = vmatmul.mubr.bf16.gmra.mxu0 %v600
        %v657 = vpop.f32.mrf.mxu0
        %v658 = vadd.f32 0.0, %v657
        %v659 = vpop.f32.mrf.mxu0
        %v660 = vadd.f32 0.0, %v659
        %v661 = vpop.f32.mrf.mxu0
        %v662 = vadd.f32 0.0, %v661
        %v663 = vpop.f32.mrf.mxu0
        %v664 = vadd.f32 0.0, %v663
        %665 = vmatprep.mubr.bf16.mxu0 0
        %666 = vmatmul.mubr.bf16.gmra.mxu0 %v603
        %v667 = vpop.f32.mrf.mxu0
        %v668 = vadd.f32 0.0, %v667
        %v669 = vpop.f32.mrf.mxu0
        %v670 = vadd.f32 0.0, %v669
        %v671 = vpop.f32.mrf.mxu0
        %v672 = vadd.f32 0.0, %v671
        %v673 = vpop.f32.mrf.mxu0
        %v674 = vadd.f32 0.0, %v673
        %675 = vmatprep.mubr.bf16.mxu0 0
        %676 = vmatmul.mubr.bf16.gmra.mxu0 %v606
        %v677 = vpop.f32.mrf.mxu0
        %v678 = vadd.f32 0.0, %v677
        %v679 = vpop.f32.mrf.mxu0
        %v680 = vadd.f32 0.0, %v679
        %v681 = vpop.f32.mrf.mxu0
        %v682 = vadd.f32 0.0, %v681
        %v683 = vpop.f32.mrf.mxu0
        %v684 = vadd.f32 0.0, %v683
        %685 = vmatprep.mubr.bf16.mxu0 0
        %686 = vmatmul.mubr.bf16.gmra.mxu0 %v609
        %v687 = vpop.f32.mrf.mxu0
        %v688 = vadd.f32 0.0, %v687
        %v689 = vpop.f32.mrf.mxu0
        %v690 = vadd.f32 0.0, %v689
        %v691 = vpop.f32.mrf.mxu0
        %v692 = vadd.f32 0.0, %v691
        %v693 = vpop.f32.mrf.mxu0
        %v694 = vadd.f32 0.0, %v693
        %695 = vmatprep.mubr.bf16.mxu0 0
        %696 = vmatmul.mubr.bf16.gmra.mxu0 %v612
        %v697 = vpop.f32.mrf.mxu0
        %v698 = vadd.f32 0.0, %v697
        %v699 = vpop.f32.mrf.mxu0
        %v700 = vadd.f32 0.0, %v699
        %v701 = vpop.f32.mrf.mxu0
        %v702 = vadd.f32 0.0, %v701
        %v703 = vpop.f32.mrf.mxu0
        %v704 = vadd.f32 0.0, %v703
        %705 = vmatprep.mubr.bf16.mxu0 0
        %706 = vmatmul.mubr.bf16.gmra.mxu0 %v615
        %v707 = vpop.f32.mrf.mxu0
        %v708 = vadd.f32 0.0, %v707
        %v709 = vpop.f32.mrf.mxu0
        %v710 = vadd.f32 0.0, %v709
        %v711 = vpop.f32.mrf.mxu0
        %v712 = vadd.f32 0.0, %v711
        %v713 = vpop.f32.mrf.mxu0
        %v714 = vadd.f32 0.0, %v713
        %715 = vmatprep.mubr.bf16.mxu0 0
        %716 = vmatmul.mubr.bf16.gmra.mxu0 %v618
        %v717 = vpop.f32.mrf.mxu0
        %v718 = vadd.f32 0.0, %v717
        %v719 = vpop.f32.mrf.mxu0
        %v720 = vadd.f32 0.0, %v719
        %v721 = vpop.f32.mrf.mxu0
        %v722 = vadd.f32 0.0, %v721
        %v723 = vpop.f32.mrf.mxu0
        %v724 = vadd.f32 0.0, %v723
        %725 = vmatprep.mubr.bf16.mxu0 0
        %726 = vmatmul.mubr.bf16.gmra.mxu0 %v621
        %v727 = vpop.f32.mrf.mxu0
        %v728 = vadd.f32 0.0, %v727
        %v729 = vpop.f32.mrf.mxu0
        %v730 = vadd.f32 0.0, %v729
        %v731 = vpop.f32.mrf.mxu0
        %v732 = vadd.f32 0.0, %v731
        %v733 = vpop.f32.mrf.mxu0
        %v734 = vadd.f32 0.0, %v733
        %735 = vdwg.mxu0
        %v736 = vpack.c.bf16 %v662, %v658
        %v737 = vpack.c.bf16 %v664, %v660
        %v738 = vpack.c.bf16 %v672, %v668
        %v739 = vpack.c.bf16 %v674, %v670
        %v740 = vpack.c.bf16 %v682, %v678
        %v741 = vpack.c.bf16 %v684, %v680
        %v742 = vpack.c.bf16 %v692, %v688
        %v743 = vpack.c.bf16 %v694, %v690
        %v744 = vpack.c.bf16 %v702, %v698
        %v745 = vpack.c.bf16 %v704, %v700
        %v746 = vpack.c.bf16 %v712, %v708
        %v747 = vpack.c.bf16 %v714, %v710
        %v748 = vpack.c.bf16 %v722, %v718
        %v749 = vpack.c.bf16 %v724, %v720
        %v750 = vpack.c.bf16 %v732, %v728
        %v751 = vpack.c.bf16 %v734, %v730
        %v752 = vld [vmem:[%s2] sm:$0x3]
        %v755 = vunpack.c.l.s4 1966171168
        %v756 = vunpack.c.0.s8 %v755
        %v757 = vlaneseq
        %v758 = vshrl.u32 %v757, 7
        %v759 = vsub.s32 %v756, %v758
        %v760 = vrot.slane %v752, %v759
        %v761 = vcombine.high %v760, %v760
        %v763 = vunpack.c.l.s4 1966171168
        %v764 = vunpack.c.0.s8 %v763
        %v765 = vlaneseq
        %v766 = vshrl.u32 %v765, 7
        %v767 = vsub.s32 %v764, %v766
        %v768 = vrot.slane %v760, %v767
        %v770 = vunpack.c.l.s4 1966171168
        %v771 = vunpack.c.0.s8 %v770
        %v772 = vlaneseq
        %v773 = vshrl.u32 %v772, 7
        %v774 = vsub.s32 %v771, %v773
        %v775 = vrot.slane %v761, %v774
        %v777 = vpack.i.b16 %v768, %v768
        %v779 = vlaneseq
        %v780 = vshrl.u32 %v779, 7
        %v781 = vsub.s32 0, %v780
        %v782 = vrot.slane %v777, %v781
        %v784 = vpack.i.b16 %v775, %v775
        %v786 = vlaneseq
        %v787 = vshrl.u32 %v786, 7
        %v788 = vsub.s32 0, %v787
        %v789 = vrot.slane %v784, %v788
        %v790 = vadd.bf16 %v736, %v782
        %v791 = vadd.bf16 %v737, %v789
        %v792 = vadd.bf16 %v738, %v782
        %v793 = vadd.bf16 %v739, %v789
        %v794 = vadd.bf16 %v740, %v782
        %v795 = vadd.bf16 %v741, %v789
        %v796 = vadd.bf16 %v742, %v782
        %v797 = vadd.bf16 %v743, %v789
        %v798 = vadd.bf16 %v744, %v782
        %v799 = vadd.bf16 %v745, %v789
        %v800 = vadd.bf16 %v746, %v782
        %v801 = vadd.bf16 %v747, %v789
        %v802 = vadd.bf16 %v748, %v782
        %v803 = vadd.bf16 %v749, %v789
        %v804 = vadd.bf16 %v750, %v782
        %v805 = vadd.bf16 %v751, %v789
        %v806 = vmax.bf16 %v790, 0
        %v807 = vmax.bf16 %v791, 0
        %v808 = vmax.bf16 %v792, 0
        %v809 = vmax.bf16 %v793, 0
        %v810 = vmax.bf16 %v794, 0
        %v811 = vmax.bf16 %v795, 0
        %v812 = vmax.bf16 %v796, 0
        %v813 = vmax.bf16 %v797, 0
        %v814 = vmax.bf16 %v798, 0
        %v815 = vmax.bf16 %v799, 0
        %v816 = vmax.bf16 %v800, 0
        %v817 = vmax.bf16 %v801, 0
        %v818 = vmax.bf16 %v802, 0
        %v819 = vmax.bf16 %v803, 0
        %v820 = vmax.bf16 %v804, 0
        %v821 = vmax.bf16 %v805, 0
        %v822 = vld [vmem:[#allocation4] sm:$0xff]
        %v823 = vld [vmem:[#allocation4 + $0x8] sm:$0xff]
        %v824 = vld [vmem:[#allocation4 + $0x10] sm:$0xff]
        %v825 = vld [vmem:[#allocation4 + $0x18] sm:$0xff]
        %v826 = vld [vmem:[#allocation4 + $0x20] sm:$0xff]
        %v827 = vld [vmem:[#allocation4 + $0x28] sm:$0xff]
        %v828 = vld [vmem:[#allocation4 + $0x30] sm:$0xff]
        %v829 = vld [vmem:[#allocation4 + $0x38] sm:$0xff]
        %v830 = vld [vmem:[#allocation4 + $0x40] sm:$0xff]
        %v831 = vld [vmem:[#allocation4 + $0x48] sm:$0xff]
        %v832 = vld [vmem:[#allocation4 + $0x50] sm:$0xff]
        %v833 = vld [vmem:[#allocation4 + $0x58] sm:$0xff]
        %v834 = vld [vmem:[#allocation4 + $0x60] sm:$0xff]
        %v835 = vld [vmem:[#allocation4 + $0x68] sm:$0xff]
        %v836 = vld [vmem:[#allocation4 + $0x70] sm:$0xff]
        %v837 = vld [vmem:[#allocation4 + $0x78] sm:$0xff]
        %v838 = vld [vmem:[#allocation4 + $0x80] sm:$0xff]
        %v839 = vld [vmem:[#allocation4 + $0x88] sm:$0xff]
        %v840 = vld [vmem:[#allocation4 + $0x90] sm:$0xff]
        %v841 = vld [vmem:[#allocation4 + $0x98] sm:$0xff]
        %v842 = vld [vmem:[#allocation4 + $0xa0] sm:$0xff]
        %v843 = vld [vmem:[#allocation4 + $0xa8] sm:$0xff]
        %v844 = vld [vmem:[#allocation4 + $0xb0] sm:$0xff]
        %v845 = vld [vmem:[#allocation4 + $0xb8] sm:$0xff]
        %v846 = vld [vmem:[#allocation4 + $0xc0] sm:$0xff]
        %v847 = vld [vmem:[#allocation4 + $0xc8] sm:$0xff]
        %v848 = vld [vmem:[#allocation4 + $0xd0] sm:$0xff]
        %v849 = vld [vmem:[#allocation4 + $0xd8] sm:$0xff]
        %v850 = vld [vmem:[#allocation4 + $0xe0] sm:$0xff]
        %v851 = vld [vmem:[#allocation4 + $0xe8] sm:$0xff]
        %v852 = vld [vmem:[#allocation4 + $0xf0] sm:$0xff]
        %v853 = vld [vmem:[#allocation4 + $0xf8] sm:$0xff]
        %v854 = vld [vmem:[#allocation4 + $0x100] sm:$0xff]
        %v855 = vld [vmem:[#allocation4 + $0x108] sm:$0xff]
        %v856 = vld [vmem:[#allocation4 + $0x110] sm:$0xff]
        %v857 = vld [vmem:[#allocation4 + $0x118] sm:$0xff]
        %v858 = vld [vmem:[#allocation4 + $0x120] sm:$0xff]
        %v859 = vld [vmem:[#allocation4 + $0x128] sm:$0xff]
        %v860 = vld [vmem:[#allocation4 + $0x130] sm:$0xff]
        %v861 = vld [vmem:[#allocation4 + $0x138] sm:$0xff]
        %v862 = vld [vmem:[#allocation4 + $0x140] sm:$0xff]
        %v863 = vld [vmem:[#allocation4 + $0x148] sm:$0xff]
        %v864 = vld [vmem:[#allocation4 + $0x150] sm:$0xff]
        %v865 = vld [vmem:[#allocation4 + $0x158] sm:$0xff]
        %v866 = vld [vmem:[#allocation4 + $0x160] sm:$0xff]
        %v867 = vld [vmem:[#allocation4 + $0x168] sm:$0xff]
        %v868 = vld [vmem:[#allocation4 + $0x170] sm:$0xff]
        %v869 = vld [vmem:[#allocation4 + $0x178] sm:$0xff]
        %v870 = vld [vmem:[#allocation4 + $0x180] sm:$0xff]
        %v871 = vld [vmem:[#allocation4 + $0x188] sm:$0xff]
        %v872 = vld [vmem:[#allocation4 + $0x190] sm:$0xff]
        %v873 = vld [vmem:[#allocation4 + $0x198] sm:$0xff]
        %v874 = vld [vmem:[#allocation4 + $0x1a0] sm:$0xff]
        %v875 = vld [vmem:[#allocation4 + $0x1a8] sm:$0xff]
        %v876 = vld [vmem:[#allocation4 + $0x1b0] sm:$0xff]
        %v877 = vld [vmem:[#allocation4 + $0x1b8] sm:$0xff]
        %v878 = vld [vmem:[#allocation4 + $0x1c0] sm:$0xff]
        %v879 = vld [vmem:[#allocation4 + $0x1c8] sm:$0xff]
        %v880 = vld [vmem:[#allocation4 + $0x1d0] sm:$0xff]
        %v881 = vld [vmem:[#allocation4 + $0x1d8] sm:$0xff]
        %v882 = vld [vmem:[#allocation4 + $0x1e0] sm:$0xff]
        %v883 = vld [vmem:[#allocation4 + $0x1e8] sm:$0xff]
        %v884 = vld [vmem:[#allocation4 + $0x1f0] sm:$0xff]
        %v885 = vld [vmem:[#allocation4 + $0x1f8] sm:$0xff]
        %v950 = vunpack.c.l.b16 %v822
        %v951 = vunpack.c.h.b16 %v822
        %v952 = vunpack.c.l.b16 %v823
        %v953 = vunpack.c.h.b16 %v823
        %v954 = vunpack.c.l.b16 %v824
        %v955 = vunpack.c.h.b16 %v824
        %v956 = vunpack.c.l.b16 %v825
        %v957 = vunpack.c.h.b16 %v825
        %v958 = vunpack.c.l.b16 %v826
        %v959 = vunpack.c.h.b16 %v826
        %v960 = vunpack.c.l.b16 %v827
        %v961 = vunpack.c.h.b16 %v827
        %v962 = vunpack.c.l.b16 %v828
        %v963 = vunpack.c.h.b16 %v828
        %v964 = vunpack.c.l.b16 %v829
        %v965 = vunpack.c.h.b16 %v829
        %v966 = vunpack.c.l.b16 %v830
        %v967 = vunpack.c.h.b16 %v830
        %v968 = vunpack.c.l.b16 %v831
        %v969 = vunpack.c.h.b16 %v831
        %v970 = vunpack.c.l.b16 %v832
        %v971 = vunpack.c.h.b16 %v832
        %v972 = vunpack.c.l.b16 %v833
        %v973 = vunpack.c.h.b16 %v833
        %v974 = vunpack.c.l.b16 %v834
        %v975 = vunpack.c.h.b16 %v834
        %v976 = vunpack.c.l.b16 %v835
        %v977 = vunpack.c.h.b16 %v835
        %v978 = vunpack.c.l.b16 %v836
        %v979 = vunpack.c.h.b16 %v836
        %v980 = vunpack.c.l.b16 %v837
        %v981 = vunpack.c.h.b16 %v837
        %v982 = vunpack.c.l.b16 %v838
        %v983 = vunpack.c.h.b16 %v838
        %v984 = vunpack.c.l.b16 %v839
        %v985 = vunpack.c.h.b16 %v839
        %v986 = vunpack.c.l.b16 %v840
        %v987 = vunpack.c.h.b16 %v840
        %v988 = vunpack.c.l.b16 %v841
        %v989 = vunpack.c.h.b16 %v841
        %v990 = vunpack.c.l.b16 %v842
        %v991 = vunpack.c.h.b16 %v842
        %v992 = vunpack.c.l.b16 %v843
        %v993 = vunpack.c.h.b16 %v843
        %v994 = vunpack.c.l.b16 %v844
        %v995 = vunpack.c.h.b16 %v844
        %v996 = vunpack.c.l.b16 %v845
        %v997 = vunpack.c.h.b16 %v845
        %v998 = vunpack.c.l.b16 %v846
        %v999 = vunpack.c.h.b16 %v846
        %v1000 = vunpack.c.l.b16 %v847
        %v1001 = vunpack.c.h.b16 %v847
        %v1002 = vunpack.c.l.b16 %v848
        %v1003 = vunpack.c.h.b16 %v848
        %v1004 = vunpack.c.l.b16 %v849
        %v1005 = vunpack.c.h.b16 %v849
        %v1006 = vunpack.c.l.b16 %v850
        %v1007 = vunpack.c.h.b16 %v850
        %v1008 = vunpack.c.l.b16 %v851
        %v1009 = vunpack.c.h.b16 %v851
        %v1010 = vunpack.c.l.b16 %v852
        %v1011 = vunpack.c.h.b16 %v852
        %v1012 = vunpack.c.l.b16 %v853
        %v1013 = vunpack.c.h.b16 %v853
        %v1014 = vunpack.c.l.b16 %v854
        %v1015 = vunpack.c.h.b16 %v854
        %v1016 = vunpack.c.l.b16 %v855
        %v1017 = vunpack.c.h.b16 %v855
        %v1018 = vunpack.c.l.b16 %v856
        %v1019 = vunpack.c.h.b16 %v856
        %v1020 = vunpack.c.l.b16 %v857
        %v1021 = vunpack.c.h.b16 %v857
        %v1022 = vunpack.c.l.b16 %v858
        %v1023 = vunpack.c.h.b16 %v858
        %v1024 = vunpack.c.l.b16 %v859
        %v1025 = vunpack.c.h.b16 %v859
        %v1026 = vunpack.c.l.b16 %v860
        %v1027 = vunpack.c.h.b16 %v860
        %v1028 = vunpack.c.l.b16 %v861
        %v1029 = vunpack.c.h.b16 %v861
        %v1030 = vunpack.c.l.b16 %v862
        %v1031 = vunpack.c.h.b16 %v862
        %v1032 = vunpack.c.l.b16 %v863
        %v1033 = vunpack.c.h.b16 %v863
        %v1034 = vunpack.c.l.b16 %v864
        %v1035 = vunpack.c.h.b16 %v864
        %v1036 = vunpack.c.l.b16 %v865
        %v1037 = vunpack.c.h.b16 %v865
        %v1038 = vunpack.c.l.b16 %v866
        %v1039 = vunpack.c.h.b16 %v866
        %v1040 = vunpack.c.l.b16 %v867
        %v1041 = vunpack.c.h.b16 %v867
        %v1042 = vunpack.c.l.b16 %v868
        %v1043 = vunpack.c.h.b16 %v868
        %v1044 = vunpack.c.l.b16 %v869
        %v1045 = vunpack.c.h.b16 %v869
        %v1046 = vunpack.c.l.b16 %v870
        %v1047 = vunpack.c.h.b16 %v870
        %v1048 = vunpack.c.l.b16 %v871
        %v1049 = vunpack.c.h.b16 %v871
        %v1050 = vunpack.c.l.b16 %v872
        %v1051 = vunpack.c.h.b16 %v872
        %v1052 = vunpack.c.l.b16 %v873
        %v1053 = vunpack.c.h.b16 %v873
        %v1054 = vunpack.c.l.b16 %v874
        %v1055 = vunpack.c.h.b16 %v874
        %v1056 = vunpack.c.l.b16 %v875
        %v1057 = vunpack.c.h.b16 %v875
        %v1058 = vunpack.c.l.b16 %v876
        %v1059 = vunpack.c.h.b16 %v876
        %v1060 = vunpack.c.l.b16 %v877
        %v1061 = vunpack.c.h.b16 %v877
        %v1062 = vunpack.c.l.b16 %v878
        %v1063 = vunpack.c.h.b16 %v878
        %v1064 = vunpack.c.l.b16 %v879
        %v1065 = vunpack.c.h.b16 %v879
        %v1066 = vunpack.c.l.b16 %v880
        %v1067 = vunpack.c.h.b16 %v880
        %v1068 = vunpack.c.l.b16 %v881
        %v1069 = vunpack.c.h.b16 %v881
        %v1070 = vunpack.c.l.b16 %v882
        %v1071 = vunpack.c.h.b16 %v882
        %v1072 = vunpack.c.l.b16 %v883
        %v1073 = vunpack.c.h.b16 %v883
        %v1074 = vunpack.c.l.b16 %v884
        %v1075 = vunpack.c.h.b16 %v884
        %v1076 = vunpack.c.l.b16 %v885
        %v1077 = vunpack.c.h.b16 %v885
        %v1078 = vpack.c.b16 %v954, %v950
        %v1079 = vpack.c.b16 %v955, %v951
        %v1080 = vpack.c.b16 %v956, %v952
        %v1081 = vpack.c.b16 %v957, %v953
        %v1082 = vpack.c.b16 %v962, %v958
        %v1083 = vpack.c.b16 %v963, %v959
        %v1084 = vpack.c.b16 %v964, %v960
        %v1085 = vpack.c.b16 %v965, %v961
        %v1086 = vpack.c.b16 %v970, %v966
        %v1087 = vpack.c.b16 %v971, %v967
        %v1088 = vpack.c.b16 %v972, %v968
        %v1089 = vpack.c.b16 %v973, %v969
        %v1090 = vpack.c.b16 %v978, %v974
        %v1091 = vpack.c.b16 %v979, %v975
        %v1092 = vpack.c.b16 %v980, %v976
        %v1093 = vpack.c.b16 %v981, %v977
        %v1094 = vpack.c.b16 %v986, %v982
        %v1095 = vpack.c.b16 %v987, %v983
        %v1096 = vpack.c.b16 %v988, %v984
        %v1097 = vpack.c.b16 %v989, %v985
        %v1098 = vpack.c.b16 %v994, %v990
        %v1099 = vpack.c.b16 %v995, %v991
        %v1100 = vpack.c.b16 %v996, %v992
        %v1101 = vpack.c.b16 %v997, %v993
        %v1102 = vpack.c.b16 %v1002, %v998
        %v1103 = vpack.c.b16 %v1003, %v999
        %v1104 = vpack.c.b16 %v1004, %v1000
        %v1105 = vpack.c.b16 %v1005, %v1001
        %v1106 = vpack.c.b16 %v1010, %v1006
        %v1107 = vpack.c.b16 %v1011, %v1007
        %v1108 = vpack.c.b16 %v1012, %v1008
        %v1109 = vpack.c.b16 %v1013, %v1009
        %v1110 = vpack.c.b16 %v1018, %v1014
        %v1111 = vpack.c.b16 %v1019, %v1015
        %v1112 = vpack.c.b16 %v1020, %v1016
        %v1113 = vpack.c.b16 %v1021, %v1017
        %v1114 = vpack.c.b16 %v1026, %v1022
        %v1115 = vpack.c.b16 %v1027, %v1023
        %v1116 = vpack.c.b16 %v1028, %v1024
        %v1117 = vpack.c.b16 %v1029, %v1025
        %v1118 = vpack.c.b16 %v1034, %v1030
        %v1119 = vpack.c.b16 %v1035, %v1031
        %v1120 = vpack.c.b16 %v1036, %v1032
        %v1121 = vpack.c.b16 %v1037, %v1033
        %v1122 = vpack.c.b16 %v1042, %v1038
        %v1123 = vpack.c.b16 %v1043, %v1039
        %v1124 = vpack.c.b16 %v1044, %v1040
        %v1125 = vpack.c.b16 %v1045, %v1041
        %v1126 = vpack.c.b16 %v1050, %v1046
        %v1127 = vpack.c.b16 %v1051, %v1047
        %v1128 = vpack.c.b16 %v1052, %v1048
        %v1129 = vpack.c.b16 %v1053, %v1049
        %v1130 = vpack.c.b16 %v1058, %v1054
        %v1131 = vpack.c.b16 %v1059, %v1055
        %v1132 = vpack.c.b16 %v1060, %v1056
        %v1133 = vpack.c.b16 %v1061, %v1057
        %v1134 = vpack.c.b16 %v1066, %v1062
        %v1135 = vpack.c.b16 %v1067, %v1063
        %v1136 = vpack.c.b16 %v1068, %v1064
        %v1137 = vpack.c.b16 %v1069, %v1065
        %v1138 = vpack.c.b16 %v1074, %v1070
        %v1139 = vpack.c.b16 %v1075, %v1071
        %v1140 = vpack.c.b16 %v1076, %v1072
        %v1141 = vpack.c.b16 %v1077, %v1073
        %1206 = vmatprep.subr.bf16.mxu0 %v1107
        %1207 = vmatpush1.bf16.msra.mxu0 %v1106
        %1208 = vmatprep.subr.bf16.mxu0 %v1103
        %1209 = vmatpush1.bf16.msra.mxu0 %v1102
        %1210 = vmatprep.subr.bf16.mxu0 %v1099
        %1211 = vmatpush1.bf16.msra.mxu0 %v1098
        %1212 = vmatprep.subr.bf16.mxu0 %v1095
        %1213 = vmatpush1.bf16.msra.mxu0 %v1094
        %1214 = vmatprep.subr.bf16.mxu0 %v1091
        %1215 = vmatpush1.bf16.msra.mxu0 %v1090
        %1216 = vmatprep.subr.bf16.mxu0 %v1087
        %1217 = vmatpush1.bf16.msra.mxu0 %v1086
        %1218 = vmatprep.subr.bf16.mxu0 %v1083
        %1219 = vmatpush1.bf16.msra.mxu0 %v1082
        %1220 = vmatprep.subr.bf16.mxu0 %v1079
        %1221 = vmatpush1.bf16.msra.mxu0 %v1078
        %1222 = vmatprep.subr.bf16.mxu0 %v1139
        %1223 = vmatpush2.bf16.msra.mxu0 %v1138
        %1224 = vmatprep.subr.bf16.mxu0 %v1135
        %1225 = vmatpush2.bf16.msra.mxu0 %v1134
        %1226 = vmatprep.subr.bf16.mxu0 %v1131
        %1227 = vmatpush2.bf16.msra.mxu0 %v1130
        %1228 = vmatprep.subr.bf16.mxu0 %v1127
        %1229 = vmatpush2.bf16.msra.mxu0 %v1126
        %1230 = vmatprep.subr.bf16.mxu0 %v1123
        %1231 = vmatpush2.bf16.msra.mxu0 %v1122
        %1232 = vmatprep.subr.bf16.mxu0 %v1119
        %1233 = vmatpush2.bf16.msra.mxu0 %v1118
        %1234 = vmatprep.subr.bf16.mxu0 %v1115
        %1235 = vmatpush2.bf16.msra.mxu0 %v1114
        %1236 = vmatprep.subr.bf16.mxu0 %v1111
        %1237 = vmatpush2.bf16.msra.mxu0 %v1110
        %1238 = vmatprep.mubr.bf16.mxu0 %v807
        %1239 = vmatmul.mubr.bf16.gmra.mxu0 %v806
        %v1240 = vpop.f32.mrf.mxu0
        %v1241 = vadd.f32 0.0, %v1240
        %v1242 = vpop.f32.mrf.mxu0
        %v1243 = vadd.f32 0.0, %v1242
        %v1244 = vpop.f32.mrf.mxu0
        %v1245 = vadd.f32 0.0, %v1244
        %v1246 = vpop.f32.mrf.mxu0
        %v1247 = vadd.f32 0.0, %v1246
        %1248 = vmatprep.mubr.bf16.mxu0 %v809
        %1249 = vmatmul.mubr.bf16.gmra.mxu0 %v808
        %v1250 = vpop.f32.mrf.mxu0
        %v1251 = vadd.f32 0.0, %v1250
        %v1252 = vpop.f32.mrf.mxu0
        %v1253 = vadd.f32 0.0, %v1252
        %v1254 = vpop.f32.mrf.mxu0
        %v1255 = vadd.f32 0.0, %v1254
        %v1256 = vpop.f32.mrf.mxu0
        %v1257 = vadd.f32 0.0, %v1256
        %1258 = vmatprep.mubr.bf16.mxu0 %v811
        %1259 = vmatmul.mubr.bf16.gmra.mxu0 %v810
        %v1260 = vpop.f32.mrf.mxu0
        %v1261 = vadd.f32 0.0, %v1260
        %v1262 = vpop.f32.mrf.mxu0
        %v1263 = vadd.f32 0.0, %v1262
        %v1264 = vpop.f32.mrf.mxu0
        %v1265 = vadd.f32 0.0, %v1264
        %v1266 = vpop.f32.mrf.mxu0
        %v1267 = vadd.f32 0.0, %v1266
        %1268 = vmatprep.mubr.bf16.mxu0 %v813
        %1269 = vmatmul.mubr.bf16.gmra.mxu0 %v812
        %v1270 = vpop.f32.mrf.mxu0
        %v1271 = vadd.f32 0.0, %v1270
        %v1272 = vpop.f32.mrf.mxu0
        %v1273 = vadd.f32 0.0, %v1272
        %v1274 = vpop.f32.mrf.mxu0
        %v1275 = vadd.f32 0.0, %v1274
        %v1276 = vpop.f32.mrf.mxu0
        %v1277 = vadd.f32 0.0, %v1276
        %1278 = vmatprep.mubr.bf16.mxu0 %v815
        %1279 = vmatmul.mubr.bf16.gmra.mxu0 %v814
        %v1280 = vpop.f32.mrf.mxu0
        %v1281 = vadd.f32 0.0, %v1280
        %v1282 = vpop.f32.mrf.mxu0
        %v1283 = vadd.f32 0.0, %v1282
        %v1284 = vpop.f32.mrf.mxu0
        %v1285 = vadd.f32 0.0, %v1284
        %v1286 = vpop.f32.mrf.mxu0
        %v1287 = vadd.f32 0.0, %v1286
        %1288 = vmatprep.mubr.bf16.mxu0 %v817
        %1289 = vmatmul.mubr.bf16.gmra.mxu0 %v816
        %v1290 = vpop.f32.mrf.mxu0
        %v1291 = vadd.f32 0.0, %v1290
        %v1292 = vpop.f32.mrf.mxu0
        %v1293 = vadd.f32 0.0, %v1292
        %v1294 = vpop.f32.mrf.mxu0
        %v1295 = vadd.f32 0.0, %v1294
        %v1296 = vpop.f32.mrf.mxu0
        %v1297 = vadd.f32 0.0, %v1296
        %1298 = vmatprep.mubr.bf16.mxu0 %v819
        %1299 = vmatmul.mubr.bf16.gmra.mxu0 %v818
        %v1300 = vpop.f32.mrf.mxu0
        %v1301 = vadd.f32 0.0, %v1300
        %v1302 = vpop.f32.mrf.mxu0
        %v1303 = vadd.f32 0.0, %v1302
        %v1304 = vpop.f32.mrf.mxu0
        %v1305 = vadd.f32 0.0, %v1304
        %v1306 = vpop.f32.mrf.mxu0
        %v1307 = vadd.f32 0.0, %v1306
        %1308 = vmatprep.mubr.bf16.mxu0 %v821
        %1309 = vmatmul.mubr.bf16.gmra.mxu0 %v820
        %v1310 = vpop.f32.mrf.mxu0
        %v1311 = vadd.f32 0.0, %v1310
        %v1312 = vpop.f32.mrf.mxu0
        %v1313 = vadd.f32 0.0, %v1312
        %v1314 = vpop.f32.mrf.mxu0
        %v1315 = vadd.f32 0.0, %v1314
        %v1316 = vpop.f32.mrf.mxu0
        %v1317 = vadd.f32 0.0, %v1316
        %1318 = vdwg.mxu0
        %1319 = vmatprep.subr.bf16.mxu0 %v1109
        %1320 = vmatpush1.bf16.msra.mxu0 %v1108
        %1321 = vmatprep.subr.bf16.mxu0 %v1105
        %1322 = vmatpush1.bf16.msra.mxu0 %v1104
        %1323 = vmatprep.subr.bf16.mxu0 %v1101
        %1324 = vmatpush1.bf16.msra.mxu0 %v1100
        %1325 = vmatprep.subr.bf16.mxu0 %v1097
        %1326 = vmatpush1.bf16.msra.mxu0 %v1096
        %1327 = vmatprep.subr.bf16.mxu0 %v1093
        %1328 = vmatpush1.bf16.msra.mxu0 %v1092
        %1329 = vmatprep.subr.bf16.mxu0 %v1089
        %1330 = vmatpush1.bf16.msra.mxu0 %v1088
        %1331 = vmatprep.subr.bf16.mxu0 %v1085
        %1332 = vmatpush1.bf16.msra.mxu0 %v1084
        %1333 = vmatprep.subr.bf16.mxu0 %v1081
        %1334 = vmatpush1.bf16.msra.mxu0 %v1080
        %1335 = vmatprep.subr.bf16.mxu0 %v1141
        %1336 = vmatpush2.bf16.msra.mxu0 %v1140
        %1337 = vmatprep.subr.bf16.mxu0 %v1137
        %1338 = vmatpush2.bf16.msra.mxu0 %v1136
        %1339 = vmatprep.subr.bf16.mxu0 %v1133
        %1340 = vmatpush2.bf16.msra.mxu0 %v1132
        %1341 = vmatprep.subr.bf16.mxu0 %v1129
        %1342 = vmatpush2.bf16.msra.mxu0 %v1128
        %1343 = vmatprep.subr.bf16.mxu0 %v1125
        %1344 = vmatpush2.bf16.msra.mxu0 %v1124
        %1345 = vmatprep.subr.bf16.mxu0 %v1121
        %1346 = vmatpush2.bf16.msra.mxu0 %v1120
        %1347 = vmatprep.subr.bf16.mxu0 %v1117
        %1348 = vmatpush2.bf16.msra.mxu0 %v1116
        %1349 = vmatprep.subr.bf16.mxu0 %v1113
        %1350 = vmatpush2.bf16.msra.mxu0 %v1112
        %1351 = vmatprep.mubr.bf16.mxu0 %v807
        %1352 = vmatmul.mubr.bf16.gmra.mxu0 %v806
        %v1353 = vpop.f32.mrf.mxu0
        %v1354 = vadd.f32 0.0, %v1353
        %v1355 = vpop.f32.mrf.mxu0
        %v1356 = vadd.f32 0.0, %v1355
        %v1357 = vpop.f32.mrf.mxu0
        %v1358 = vadd.f32 0.0, %v1357
        %v1359 = vpop.f32.mrf.mxu0
        %v1360 = vadd.f32 0.0, %v1359
        %1361 = vmatprep.mubr.bf16.mxu0 %v809
        %1362 = vmatmul.mubr.bf16.gmra.mxu0 %v808
        %v1363 = vpop.f32.mrf.mxu0
        %v1364 = vadd.f32 0.0, %v1363
        %v1365 = vpop.f32.mrf.mxu0
        %v1366 = vadd.f32 0.0, %v1365
        %v1367 = vpop.f32.mrf.mxu0
        %v1368 = vadd.f32 0.0, %v1367
        %v1369 = vpop.f32.mrf.mxu0
        %v1370 = vadd.f32 0.0, %v1369
        %1371 = vmatprep.mubr.bf16.mxu0 %v811
        %1372 = vmatmul.mubr.bf16.gmra.mxu0 %v810
        %v1373 = vpop.f32.mrf.mxu0
        %v1374 = vadd.f32 0.0, %v1373
        %v1375 = vpop.f32.mrf.mxu0
        %v1376 = vadd.f32 0.0, %v1375
        %v1377 = vpop.f32.mrf.mxu0
        %v1378 = vadd.f32 0.0, %v1377
        %v1379 = vpop.f32.mrf.mxu0
        %v1380 = vadd.f32 0.0, %v1379
        %1381 = vmatprep.mubr.bf16.mxu0 %v813
        %1382 = vmatmul.mubr.bf16.gmra.mxu0 %v812
        %v1383 = vpop.f32.mrf.mxu0
        %v1384 = vadd.f32 0.0, %v1383
        %v1385 = vpop.f32.mrf.mxu0
        %v1386 = vadd.f32 0.0, %v1385
        %v1387 = vpop.f32.mrf.mxu0
        %v1388 = vadd.f32 0.0, %v1387
        %v1389 = vpop.f32.mrf.mxu0
        %v1390 = vadd.f32 0.0, %v1389
        %1391 = vmatprep.mubr.bf16.mxu0 %v815
        %1392 = vmatmul.mubr.bf16.gmra.mxu0 %v814
        %v1393 = vpop.f32.mrf.mxu0
        %v1394 = vadd.f32 0.0, %v1393
        %v1395 = vpop.f32.mrf.mxu0
        %v1396 = vadd.f32 0.0, %v1395
        %v1397 = vpop.f32.mrf.mxu0
        %v1398 = vadd.f32 0.0, %v1397
        %v1399 = vpop.f32.mrf.mxu0
        %v1400 = vadd.f32 0.0, %v1399
        %1401 = vmatprep.mubr.bf16.mxu0 %v817
        %1402 = vmatmul.mubr.bf16.gmra.mxu0 %v816
        %v1403 = vpop.f32.mrf.mxu0
        %v1404 = vadd.f32 0.0, %v1403
        %v1405 = vpop.f32.mrf.mxu0
        %v1406 = vadd.f32 0.0, %v1405
        %v1407 = vpop.f32.mrf.mxu0
        %v1408 = vadd.f32 0.0, %v1407
        %v1409 = vpop.f32.mrf.mxu0
        %v1410 = vadd.f32 0.0, %v1409
        %1411 = vmatprep.mubr.bf16.mxu0 %v819
        %1412 = vmatmul.mubr.bf16.gmra.mxu0 %v818
        %v1413 = vpop.f32.mrf.mxu0
        %v1414 = vadd.f32 0.0, %v1413
        %v1415 = vpop.f32.mrf.mxu0
        %v1416 = vadd.f32 0.0, %v1415
        %v1417 = vpop.f32.mrf.mxu0
        %v1418 = vadd.f32 0.0, %v1417
        %v1419 = vpop.f32.mrf.mxu0
        %v1420 = vadd.f32 0.0, %v1419
        %1421 = vmatprep.mubr.bf16.mxu0 %v821
        %1422 = vmatmul.mubr.bf16.gmra.mxu0 %v820
        %v1423 = vpop.f32.mrf.mxu0
        %v1424 = vadd.f32 0.0, %v1423
        %v1425 = vpop.f32.mrf.mxu0
        %v1426 = vadd.f32 0.0, %v1425
        %v1427 = vpop.f32.mrf.mxu0
        %v1428 = vadd.f32 0.0, %v1427
        %v1429 = vpop.f32.mrf.mxu0
        %v1430 = vadd.f32 0.0, %v1429
        %1431 = vdwg.mxu0
        %v1432 = vpack.c.bf16 %v1245, %v1241
        %v1433 = vpack.c.bf16 %v1247, %v1243
        %v1434 = vpack.c.bf16 %v1358, %v1354
        %v1435 = vpack.c.bf16 %v1360, %v1356
        %v1436 = vpack.c.bf16 %v1255, %v1251
        %v1437 = vpack.c.bf16 %v1257, %v1253
        %v1438 = vpack.c.bf16 %v1368, %v1364
        %v1439 = vpack.c.bf16 %v1370, %v1366
        %v1440 = vpack.c.bf16 %v1265, %v1261
        %v1441 = vpack.c.bf16 %v1267, %v1263
        %v1442 = vpack.c.bf16 %v1378, %v1374
        %v1443 = vpack.c.bf16 %v1380, %v1376
        %v1444 = vpack.c.bf16 %v1275, %v1271
        %v1445 = vpack.c.bf16 %v1277, %v1273
        %v1446 = vpack.c.bf16 %v1388, %v1384
        %v1447 = vpack.c.bf16 %v1390, %v1386
        %v1448 = vpack.c.bf16 %v1285, %v1281
        %v1449 = vpack.c.bf16 %v1287, %v1283
        %v1450 = vpack.c.bf16 %v1398, %v1394
        %v1451 = vpack.c.bf16 %v1400, %v1396
        %v1452 = vpack.c.bf16 %v1295, %v1291
        %v1453 = vpack.c.bf16 %v1297, %v1293
        %v1454 = vpack.c.bf16 %v1408, %v1404
        %v1455 = vpack.c.bf16 %v1410, %v1406
        %v1456 = vpack.c.bf16 %v1305, %v1301
        %v1457 = vpack.c.bf16 %v1307, %v1303
        %v1458 = vpack.c.bf16 %v1418, %v1414
        %v1459 = vpack.c.bf16 %v1420, %v1416
        %v1460 = vpack.c.bf16 %v1315, %v1311
        %v1461 = vpack.c.bf16 %v1317, %v1313
        %v1462 = vpack.c.bf16 %v1428, %v1424
        %v1463 = vpack.c.bf16 %v1430, %v1426
        %v1464 = vld [vmem:[%s4] sm:$0xf]
        %v1467 = vunpack.c.l.s4 1966171168
        %v1468 = vunpack.c.0.s8 %v1467
        %v1469 = vlaneseq
        %v1470 = vshrl.u32 %v1469, 7
        %v1471 = vsub.s32 %v1468, %v1470
        %v1472 = vrot.slane %v1464, %v1471
        %v1473 = vcombine.high %v1472, %v1472
        %v1475 = vunpack.c.l.s4 1966171168
        %v1476 = vunpack.c.0.s8 %v1475
        %v1477 = vlaneseq
        %v1478 = vshrl.u32 %v1477, 7
        %v1479 = vsub.s32 %v1476, %v1478
        %v1480 = vrot.slane %v1472, %v1479
        %v1482 = vunpack.c.l.s4 1966171168
        %v1483 = vunpack.c.0.s8 %v1482
        %v1484 = vlaneseq
        %v1485 = vshrl.u32 %v1484, 7
        %v1486 = vsub.s32 %v1483, %v1485
        %v1487 = vrot.slane %v1473, %v1486
        %v1488 = vcombine.high %v1480, %v1480
        %v1489 = vcombine.high %v1487, %v1487
        %v1491 = vpack.i.b16 %v1480, %v1480
        %v1493 = vlaneseq
        %v1494 = vshrl.u32 %v1493, 7
        %v1495 = vsub.s32 0, %v1494
        %v1496 = vrot.slane %v1491, %v1495
        %v1498 = vpack.i.b16 %v1487, %v1487
        %v1500 = vlaneseq
        %v1501 = vshrl.u32 %v1500, 7
        %v1502 = vsub.s32 0, %v1501
        %v1503 = vrot.slane %v1498, %v1502
        %v1505 = vpack.i.b16 %v1488, %v1488
        %v1507 = vlaneseq
        %v1508 = vshrl.u32 %v1507, 7
        %v1509 = vsub.s32 0, %v1508
        %v1510 = vrot.slane %v1505, %v1509
        %v1512 = vpack.i.b16 %v1489, %v1489
        %v1514 = vlaneseq
        %v1515 = vshrl.u32 %v1514, 7
        %v1516 = vsub.s32 0, %v1515
        %v1517 = vrot.slane %v1512, %v1516
        %v1518 = vadd.bf16 %v1432, %v1496
        %v1519 = vadd.bf16 %v1433, %v1503
        %v1520 = vadd.bf16 %v1434, %v1510
        %v1521 = vadd.bf16 %v1435, %v1517
        %v1522 = vadd.bf16 %v1436, %v1496
        %v1523 = vadd.bf16 %v1437, %v1503
        %v1524 = vadd.bf16 %v1438, %v1510
        %v1525 = vadd.bf16 %v1439, %v1517
        %v1526 = vadd.bf16 %v1440, %v1496
        %v1527 = vadd.bf16 %v1441, %v1503
        %v1528 = vadd.bf16 %v1442, %v1510
        %v1529 = vadd.bf16 %v1443, %v1517
        %v1530 = vadd.bf16 %v1444, %v1496
        %v1531 = vadd.bf16 %v1445, %v1503
        %v1532 = vadd.bf16 %v1446, %v1510
        %v1533 = vadd.bf16 %v1447, %v1517
        %v1534 = vadd.bf16 %v1448, %v1496
        %v1535 = vadd.bf16 %v1449, %v1503
        %v1536 = vadd.bf16 %v1450, %v1510
        %v1537 = vadd.bf16 %v1451, %v1517
        %v1538 = vadd.bf16 %v1452, %v1496
        %v1539 = vadd.bf16 %v1453, %v1503
        %v1540 = vadd.bf16 %v1454, %v1510
        %v1541 = vadd.bf16 %v1455, %v1517
        %v1542 = vadd.bf16 %v1456, %v1496
        %v1543 = vadd.bf16 %v1457, %v1503
        %v1544 = vadd.bf16 %v1458, %v1510
        %v1545 = vadd.bf16 %v1459, %v1517
        %v1546 = vadd.bf16 %v1460, %v1496
        %v1547 = vadd.bf16 %v1461, %v1503
        %v1548 = vadd.bf16 %v1462, %v1510
        %v1549 = vadd.bf16 %v1463, %v1517
        %v1550 = vmax.bf16 %v1518, 0
        %v1551 = vmax.bf16 %v1519, 0
        %v1552 = vmax.bf16 %v1520, 0
        %v1553 = vmax.bf16 %v1521, 0
        %v1554 = vmax.bf16 %v1522, 0
        %v1555 = vmax.bf16 %v1523, 0
        %v1556 = vmax.bf16 %v1524, 0
        %v1557 = vmax.bf16 %v1525, 0
        %v1558 = vmax.bf16 %v1526, 0
        %v1559 = vmax.bf16 %v1527, 0
        %v1560 = vmax.bf16 %v1528, 0
        %v1561 = vmax.bf16 %v1529, 0
        %v1562 = vmax.bf16 %v1530, 0
        %v1563 = vmax.bf16 %v1531, 0
        %v1564 = vmax.bf16 %v1532, 0
        %v1565 = vmax.bf16 %v1533, 0
        %v1566 = vmax.bf16 %v1534, 0
        %v1567 = vmax.bf16 %v1535, 0
        %v1568 = vmax.bf16 %v1536, 0
        %v1569 = vmax.bf16 %v1537, 0
        %v1570 = vmax.bf16 %v1538, 0
        %v1571 = vmax.bf16 %v1539, 0
        %v1572 = vmax.bf16 %v1540, 0
        %v1573 = vmax.bf16 %v1541, 0
        %v1574 = vmax.bf16 %v1542, 0
        %v1575 = vmax.bf16 %v1543, 0
        %v1576 = vmax.bf16 %v1544, 0
        %v1577 = vmax.bf16 %v1545, 0
        %v1578 = vmax.bf16 %v1546, 0
        %v1579 = vmax.bf16 %v1547, 0
        %v1580 = vmax.bf16 %v1548, 0
        %v1581 = vmax.bf16 %v1549, 0
        %v1582 = vld [vmem:[#allocation6] sm:$0xff]
        %v1583 = vld [vmem:[#allocation6 + $0x8] sm:$0xff]
        %v1584 = vld [vmem:[#allocation6 + $0x10] sm:$0xff]
        %v1585 = vld [vmem:[#allocation6 + $0x18] sm:$0xff]
        %v1586 = vld [vmem:[#allocation6 + $0x20] sm:$0xff]
        %v1587 = vld [vmem:[#allocation6 + $0x28] sm:$0xff]
        %v1588 = vld [vmem:[#allocation6 + $0x30] sm:$0xff]
        %v1589 = vld [vmem:[#allocation6 + $0x38] sm:$0xff]
        %v1590 = vld [vmem:[#allocation6 + $0x40] sm:$0xff]
        %v1591 = vld [vmem:[#allocation6 + $0x48] sm:$0xff]
        %v1592 = vld [vmem:[#allocation6 + $0x50] sm:$0xff]
        %v1593 = vld [vmem:[#allocation6 + $0x58] sm:$0xff]
        %v1594 = vld [vmem:[#allocation6 + $0x60] sm:$0xff]
        %v1595 = vld [vmem:[#allocation6 + $0x68] sm:$0xff]
        %v1596 = vld [vmem:[#allocation6 + $0x70] sm:$0xff]
        %v1597 = vld [vmem:[#allocation6 + $0x78] sm:$0xff]
        %v1598 = vld [vmem:[#allocation6 + $0x80] sm:$0xff]
        %v1599 = vld [vmem:[#allocation6 + $0x88] sm:$0xff]
        %v1600 = vld [vmem:[#allocation6 + $0x90] sm:$0xff]
        %v1601 = vld [vmem:[#allocation6 + $0x98] sm:$0xff]
        %v1602 = vld [vmem:[#allocation6 + $0xa0] sm:$0xff]
        %v1603 = vld [vmem:[#allocation6 + $0xa8] sm:$0xff]
        %v1604 = vld [vmem:[#allocation6 + $0xb0] sm:$0xff]
        %v1605 = vld [vmem:[#allocation6 + $0xb8] sm:$0xff]
        %v1606 = vld [vmem:[#allocation6 + $0xc0] sm:$0xff]
        %v1607 = vld [vmem:[#allocation6 + $0xc8] sm:$0xff]
        %v1608 = vld [vmem:[#allocation6 + $0xd0] sm:$0xff]
        %v1609 = vld [vmem:[#allocation6 + $0xd8] sm:$0xff]
        %v1610 = vld [vmem:[#allocation6 + $0xe0] sm:$0xff]
        %v1611 = vld [vmem:[#allocation6 + $0xe8] sm:$0xff]
        %v1612 = vld [vmem:[#allocation6 + $0xf0] sm:$0xff]
        %v1613 = vld [vmem:[#allocation6 + $0xf8] sm:$0xff]
        %v1614 = vld [vmem:[#allocation6 + $0x100] sm:$0xff]
        %v1615 = vld [vmem:[#allocation6 + $0x108] sm:$0xff]
        %v1616 = vld [vmem:[#allocation6 + $0x110] sm:$0xff]
        %v1617 = vld [vmem:[#allocation6 + $0x118] sm:$0xff]
        %v1618 = vld [vmem:[#allocation6 + $0x120] sm:$0xff]
        %v1619 = vld [vmem:[#allocation6 + $0x128] sm:$0xff]
        %v1620 = vld [vmem:[#allocation6 + $0x130] sm:$0xff]
        %v1621 = vld [vmem:[#allocation6 + $0x138] sm:$0xff]
        %v1622 = vld [vmem:[#allocation6 + $0x140] sm:$0xff]
        %v1623 = vld [vmem:[#allocation6 + $0x148] sm:$0xff]
        %v1624 = vld [vmem:[#allocation6 + $0x150] sm:$0xff]
        %v1625 = vld [vmem:[#allocation6 + $0x158] sm:$0xff]
        %v1626 = vld [vmem:[#allocation6 + $0x160] sm:$0xff]
        %v1627 = vld [vmem:[#allocation6 + $0x168] sm:$0xff]
        %v1628 = vld [vmem:[#allocation6 + $0x170] sm:$0xff]
        %v1629 = vld [vmem:[#allocation6 + $0x178] sm:$0xff]
        %v1630 = vld [vmem:[#allocation6 + $0x180] sm:$0xff]
        %v1631 = vld [vmem:[#allocation6 + $0x188] sm:$0xff]
        %v1632 = vld [vmem:[#allocation6 + $0x190] sm:$0xff]
        %v1633 = vld [vmem:[#allocation6 + $0x198] sm:$0xff]
        %v1634 = vld [vmem:[#allocation6 + $0x1a0] sm:$0xff]
        %v1635 = vld [vmem:[#allocation6 + $0x1a8] sm:$0xff]
        %v1636 = vld [vmem:[#allocation6 + $0x1b0] sm:$0xff]
        %v1637 = vld [vmem:[#allocation6 + $0x1b8] sm:$0xff]
        %v1638 = vld [vmem:[#allocation6 + $0x1c0] sm:$0xff]
        %v1639 = vld [vmem:[#allocation6 + $0x1c8] sm:$0xff]
        %v1640 = vld [vmem:[#allocation6 + $0x1d0] sm:$0xff]
        %v1641 = vld [vmem:[#allocation6 + $0x1d8] sm:$0xff]
        %v1642 = vld [vmem:[#allocation6 + $0x1e0] sm:$0xff]
        %v1643 = vld [vmem:[#allocation6 + $0x1e8] sm:$0xff]
        %v1644 = vld [vmem:[#allocation6 + $0x1f0] sm:$0xff]
        %v1645 = vld [vmem:[#allocation6 + $0x1f8] sm:$0xff]
        %v1710 = vunpack.c.l.b16 %v1582
        %v1711 = vunpack.c.h.b16 %v1582
        %v1712 = vunpack.c.l.b16 %v1583
        %v1713 = vunpack.c.h.b16 %v1583
        %v1714 = vunpack.c.l.b16 %v1584
        %v1715 = vunpack.c.h.b16 %v1584
        %v1716 = vunpack.c.l.b16 %v1585
        %v1717 = vunpack.c.h.b16 %v1585
        %v1718 = vunpack.c.l.b16 %v1586
        %v1719 = vunpack.c.h.b16 %v1586
        %v1720 = vunpack.c.l.b16 %v1587
        %v1721 = vunpack.c.h.b16 %v1587
        %v1722 = vunpack.c.l.b16 %v1588
        %v1723 = vunpack.c.h.b16 %v1588
        %v1724 = vunpack.c.l.b16 %v1589
        %v1725 = vunpack.c.h.b16 %v1589
        %v1726 = vunpack.c.l.b16 %v1590
        %v1727 = vunpack.c.h.b16 %v1590
        %v1728 = vunpack.c.l.b16 %v1591
        %v1729 = vunpack.c.h.b16 %v1591
        %v1730 = vunpack.c.l.b16 %v1592
        %v1731 = vunpack.c.h.b16 %v1592
        %v1732 = vunpack.c.l.b16 %v1593
        %v1733 = vunpack.c.h.b16 %v1593
        %v1734 = vunpack.c.l.b16 %v1594
        %v1735 = vunpack.c.h.b16 %v1594
        %v1736 = vunpack.c.l.b16 %v1595
        %v1737 = vunpack.c.h.b16 %v1595
        %v1738 = vunpack.c.l.b16 %v1596
        %v1739 = vunpack.c.h.b16 %v1596
        %v1740 = vunpack.c.l.b16 %v1597
        %v1741 = vunpack.c.h.b16 %v1597
        %v1742 = vunpack.c.l.b16 %v1598
        %v1743 = vunpack.c.h.b16 %v1598
        %v1744 = vunpack.c.l.b16 %v1599
        %v1745 = vunpack.c.h.b16 %v1599
        %v1746 = vunpack.c.l.b16 %v1600
        %v1747 = vunpack.c.h.b16 %v1600
        %v1748 = vunpack.c.l.b16 %v1601
        %v1749 = vunpack.c.h.b16 %v1601
        %v1750 = vunpack.c.l.b16 %v1602
        %v1751 = vunpack.c.h.b16 %v1602
        %v1752 = vunpack.c.l.b16 %v1603
        %v1753 = vunpack.c.h.b16 %v1603
        %v1754 = vunpack.c.l.b16 %v1604
        %v1755 = vunpack.c.h.b16 %v1604
        %v1756 = vunpack.c.l.b16 %v1605
        %v1757 = vunpack.c.h.b16 %v1605
        %v1758 = vunpack.c.l.b16 %v1606
        %v1759 = vunpack.c.h.b16 %v1606
        %v1760 = vunpack.c.l.b16 %v1607
        %v1761 = vunpack.c.h.b16 %v1607
        %v1762 = vunpack.c.l.b16 %v1608
        %v1763 = vunpack.c.h.b16 %v1608
        %v1764 = vunpack.c.l.b16 %v1609
        %v1765 = vunpack.c.h.b16 %v1609
        %v1766 = vunpack.c.l.b16 %v1610
        %v1767 = vunpack.c.h.b16 %v1610
        %v1768 = vunpack.c.l.b16 %v1611
        %v1769 = vunpack.c.h.b16 %v1611
        %v1770 = vunpack.c.l.b16 %v1612
        %v1771 = vunpack.c.h.b16 %v1612
        %v1772 = vunpack.c.l.b16 %v1613
        %v1773 = vunpack.c.h.b16 %v1613
        %v1774 = vunpack.c.l.b16 %v1614
        %v1775 = vunpack.c.h.b16 %v1614
        %v1776 = vunpack.c.l.b16 %v1615
        %v1777 = vunpack.c.h.b16 %v1615
        %v1778 = vunpack.c.l.b16 %v1616
        %v1779 = vunpack.c.h.b16 %v1616
        %v1780 = vunpack.c.l.b16 %v1617
        %v1781 = vunpack.c.h.b16 %v1617
        %v1782 = vunpack.c.l.b16 %v1618
        %v1783 = vunpack.c.h.b16 %v1618
        %v1784 = vunpack.c.l.b16 %v1619
        %v1785 = vunpack.c.h.b16 %v1619
        %v1786 = vunpack.c.l.b16 %v1620
        %v1787 = vunpack.c.h.b16 %v1620
        %v1788 = vunpack.c.l.b16 %v1621
        %v1789 = vunpack.c.h.b16 %v1621
        %v1790 = vunpack.c.l.b16 %v1622
        %v1791 = vunpack.c.h.b16 %v1622
        %v1792 = vunpack.c.l.b16 %v1623
        %v1793 = vunpack.c.h.b16 %v1623
        %v1794 = vunpack.c.l.b16 %v1624
        %v1795 = vunpack.c.h.b16 %v1624
        %v1796 = vunpack.c.l.b16 %v1625
        %v1797 = vunpack.c.h.b16 %v1625
        %v1798 = vunpack.c.l.b16 %v1626
        %v1799 = vunpack.c.h.b16 %v1626
        %v1800 = vunpack.c.l.b16 %v1627
        %v1801 = vunpack.c.h.b16 %v1627
        %v1802 = vunpack.c.l.b16 %v1628
        %v1803 = vunpack.c.h.b16 %v1628
        %v1804 = vunpack.c.l.b16 %v1629
        %v1805 = vunpack.c.h.b16 %v1629
        %v1806 = vunpack.c.l.b16 %v1630
        %v1807 = vunpack.c.h.b16 %v1630
        %v1808 = vunpack.c.l.b16 %v1631
        %v1809 = vunpack.c.h.b16 %v1631
        %v1810 = vunpack.c.l.b16 %v1632
        %v1811 = vunpack.c.h.b16 %v1632
        %v1812 = vunpack.c.l.b16 %v1633
        %v1813 = vunpack.c.h.b16 %v1633
        %v1814 = vunpack.c.l.b16 %v1634
        %v1815 = vunpack.c.h.b16 %v1634
        %v1816 = vunpack.c.l.b16 %v1635
        %v1817 = vunpack.c.h.b16 %v1635
        %v1818 = vunpack.c.l.b16 %v1636
        %v1819 = vunpack.c.h.b16 %v1636
        %v1820 = vunpack.c.l.b16 %v1637
        %v1821 = vunpack.c.h.b16 %v1637
        %v1822 = vunpack.c.l.b16 %v1638
        %v1823 = vunpack.c.h.b16 %v1638
        %v1824 = vunpack.c.l.b16 %v1639
        %v1825 = vunpack.c.h.b16 %v1639
        %v1826 = vunpack.c.l.b16 %v1640
        %v1827 = vunpack.c.h.b16 %v1640
        %v1828 = vunpack.c.l.b16 %v1641
        %v1829 = vunpack.c.h.b16 %v1641
        %v1830 = vunpack.c.l.b16 %v1642
        %v1831 = vunpack.c.h.b16 %v1642
        %v1832 = vunpack.c.l.b16 %v1643
        %v1833 = vunpack.c.h.b16 %v1643
        %v1834 = vunpack.c.l.b16 %v1644
        %v1835 = vunpack.c.h.b16 %v1644
        %v1836 = vunpack.c.l.b16 %v1645
        %v1837 = vunpack.c.h.b16 %v1645
        %v1838 = vpack.c.b16 %v1712, %v1710
        %v1839 = vpack.c.b16 %v1713, %v1711
        %v1840 = vpack.c.b16 %v1716, %v1714
        %v1841 = vpack.c.b16 %v1717, %v1715
        %v1842 = vpack.c.b16 %v1720, %v1718
        %v1843 = vpack.c.b16 %v1721, %v1719
        %v1844 = vpack.c.b16 %v1724, %v1722
        %v1845 = vpack.c.b16 %v1725, %v1723
        %v1846 = vpack.c.b16 %v1728, %v1726
        %v1847 = vpack.c.b16 %v1729, %v1727
        %v1848 = vpack.c.b16 %v1732, %v1730
        %v1849 = vpack.c.b16 %v1733, %v1731
        %v1850 = vpack.c.b16 %v1736, %v1734
        %v1851 = vpack.c.b16 %v1737, %v1735
        %v1852 = vpack.c.b16 %v1740, %v1738
        %v1853 = vpack.c.b16 %v1741, %v1739
        %v1854 = vpack.c.b16 %v1744, %v1742
        %v1855 = vpack.c.b16 %v1745, %v1743
        %v1856 = vpack.c.b16 %v1748, %v1746
        %v1857 = vpack.c.b16 %v1749, %v1747
        %v1858 = vpack.c.b16 %v1752, %v1750
        %v1859 = vpack.c.b16 %v1753, %v1751
        %v1860 = vpack.c.b16 %v1756, %v1754
        %v1861 = vpack.c.b16 %v1757, %v1755
        %v1862 = vpack.c.b16 %v1760, %v1758
        %v1863 = vpack.c.b16 %v1761, %v1759
        %v1864 = vpack.c.b16 %v1764, %v1762
        %v1865 = vpack.c.b16 %v1765, %v1763
        %v1866 = vpack.c.b16 %v1768, %v1766
        %v1867 = vpack.c.b16 %v1769, %v1767
        %v1868 = vpack.c.b16 %v1772, %v1770
        %v1869 = vpack.c.b16 %v1773, %v1771
        %v1870 = vpack.c.b16 %v1776, %v1774
        %v1871 = vpack.c.b16 %v1777, %v1775
        %v1872 = vpack.c.b16 %v1780, %v1778
        %v1873 = vpack.c.b16 %v1781, %v1779
        %v1874 = vpack.c.b16 %v1784, %v1782
        %v1875 = vpack.c.b16 %v1785, %v1783
        %v1876 = vpack.c.b16 %v1788, %v1786
        %v1877 = vpack.c.b16 %v1789, %v1787
        %v1878 = vpack.c.b16 %v1792, %v1790
        %v1879 = vpack.c.b16 %v1793, %v1791
        %v1880 = vpack.c.b16 %v1796, %v1794
        %v1881 = vpack.c.b16 %v1797, %v1795
        %v1882 = vpack.c.b16 %v1800, %v1798
        %v1883 = vpack.c.b16 %v1801, %v1799
        %v1884 = vpack.c.b16 %v1804, %v1802
        %v1885 = vpack.c.b16 %v1805, %v1803
        %v1886 = vpack.c.b16 %v1808, %v1806
        %v1887 = vpack.c.b16 %v1809, %v1807
        %v1888 = vpack.c.b16 %v1812, %v1810
        %v1889 = vpack.c.b16 %v1813, %v1811
        %v1890 = vpack.c.b16 %v1816, %v1814
        %v1891 = vpack.c.b16 %v1817, %v1815
        %v1892 = vpack.c.b16 %v1820, %v1818
        %v1893 = vpack.c.b16 %v1821, %v1819
        %v1894 = vpack.c.b16 %v1824, %v1822
        %v1895 = vpack.c.b16 %v1825, %v1823
        %v1896 = vpack.c.b16 %v1828, %v1826
        %v1897 = vpack.c.b16 %v1829, %v1827
        %v1898 = vpack.c.b16 %v1832, %v1830
        %v1899 = vpack.c.b16 %v1833, %v1831
        %v1900 = vpack.c.b16 %v1836, %v1834
        %v1901 = vpack.c.b16 %v1837, %v1835
        %1966 = vmatprep.subr.bf16.mxu0 %v1853
        %1967 = vmatpush1.bf16.msra.mxu0 %v1852
        %1968 = vmatprep.subr.bf16.mxu0 %v1851
        %1969 = vmatpush1.bf16.msra.mxu0 %v1850
        %1970 = vmatprep.subr.bf16.mxu0 %v1849
        %1971 = vmatpush1.bf16.msra.mxu0 %v1848
        %1972 = vmatprep.subr.bf16.mxu0 %v1847
        %1973 = vmatpush1.bf16.msra.mxu0 %v1846
        %1974 = vmatprep.subr.bf16.mxu0 %v1845
        %1975 = vmatpush1.bf16.msra.mxu0 %v1844
        %1976 = vmatprep.subr.bf16.mxu0 %v1843
        %1977 = vmatpush1.bf16.msra.mxu0 %v1842
        %1978 = vmatprep.subr.bf16.mxu0 %v1841
        %1979 = vmatpush1.bf16.msra.mxu0 %v1840
        %1980 = vmatprep.subr.bf16.mxu0 %v1839
        %1981 = vmatpush1.bf16.msra.mxu0 %v1838
        %1982 = vmatprep.subr.bf16.mxu0 %v1869
        %1983 = vmatpush2.bf16.msra.mxu0 %v1868
        %1984 = vmatprep.subr.bf16.mxu0 %v1867
        %1985 = vmatpush2.bf16.msra.mxu0 %v1866
        %1986 = vmatprep.subr.bf16.mxu0 %v1865
        %1987 = vmatpush2.bf16.msra.mxu0 %v1864
        %1988 = vmatprep.subr.bf16.mxu0 %v1863
        %1989 = vmatpush2.bf16.msra.mxu0 %v1862
        %1990 = vmatprep.subr.bf16.mxu0 %v1861
        %1991 = vmatpush2.bf16.msra.mxu0 %v1860
        %1992 = vmatprep.subr.bf16.mxu0 %v1859
        %1993 = vmatpush2.bf16.msra.mxu0 %v1858
        %1994 = vmatprep.subr.bf16.mxu0 %v1857
        %1995 = vmatpush2.bf16.msra.mxu0 %v1856
        %1996 = vmatprep.subr.bf16.mxu0 %v1855
        %1997 = vmatpush2.bf16.msra.mxu0 %v1854
        %1998 = vmatprep.mubr.bf16.mxu0 %v1551
        %1999 = vmatmul.mubr.bf16.gmra.mxu0 %v1550
        %v2000 = vpop.f32.mrf.mxu0
        %v2001 = vadd.f32 0.0, %v2000
        %v2002 = vpop.f32.mrf.mxu0
        %v2003 = vadd.f32 0.0, %v2002
        %v2004 = vpop.f32.mrf.mxu0
        %v2005 = vadd.f32 0.0, %v2004
        %v2006 = vpop.f32.mrf.mxu0
        %v2007 = vadd.f32 0.0, %v2006
        %2008 = vmatprep.mubr.bf16.mxu0 %v1555
        %2009 = vmatmul.mubr.bf16.gmra.mxu0 %v1554
        %v2010 = vpop.f32.mrf.mxu0
        %v2011 = vadd.f32 0.0, %v2010
        %v2012 = vpop.f32.mrf.mxu0
        %v2013 = vadd.f32 0.0, %v2012
        %v2014 = vpop.f32.mrf.mxu0
        %v2015 = vadd.f32 0.0, %v2014
        %v2016 = vpop.f32.mrf.mxu0
        %v2017 = vadd.f32 0.0, %v2016
        %2018 = vmatprep.mubr.bf16.mxu0 %v1559
        %2019 = vmatmul.mubr.bf16.gmra.mxu0 %v1558
        %v2020 = vpop.f32.mrf.mxu0
        %v2021 = vadd.f32 0.0, %v2020
        %v2022 = vpop.f32.mrf.mxu0
        %v2023 = vadd.f32 0.0, %v2022
        %v2024 = vpop.f32.mrf.mxu0
        %v2025 = vadd.f32 0.0, %v2024
        %v2026 = vpop.f32.mrf.mxu0
        %v2027 = vadd.f32 0.0, %v2026
        %2028 = vmatprep.mubr.bf16.mxu0 %v1563
        %2029 = vmatmul.mubr.bf16.gmra.mxu0 %v1562
        %v2030 = vpop.f32.mrf.mxu0
        %v2031 = vadd.f32 0.0, %v2030
        %v2032 = vpop.f32.mrf.mxu0
        %v2033 = vadd.f32 0.0, %v2032
        %v2034 = vpop.f32.mrf.mxu0
        %v2035 = vadd.f32 0.0, %v2034
        %v2036 = vpop.f32.mrf.mxu0
        %v2037 = vadd.f32 0.0, %v2036
        %2038 = vmatprep.mubr.bf16.mxu0 %v1567
        %2039 = vmatmul.mubr.bf16.gmra.mxu0 %v1566
        %v2040 = vpop.f32.mrf.mxu0
        %v2041 = vadd.f32 0.0, %v2040
        %v2042 = vpop.f32.mrf.mxu0
        %v2043 = vadd.f32 0.0, %v2042
        %v2044 = vpop.f32.mrf.mxu0
        %v2045 = vadd.f32 0.0, %v2044
        %v2046 = vpop.f32.mrf.mxu0
        %v2047 = vadd.f32 0.0, %v2046
        %2048 = vmatprep.mubr.bf16.mxu0 %v1571
        %2049 = vmatmul.mubr.bf16.gmra.mxu0 %v1570
        %v2050 = vpop.f32.mrf.mxu0
        %v2051 = vadd.f32 0.0, %v2050
        %v2052 = vpop.f32.mrf.mxu0
        %v2053 = vadd.f32 0.0, %v2052
        %v2054 = vpop.f32.mrf.mxu0
        %v2055 = vadd.f32 0.0, %v2054
        %v2056 = vpop.f32.mrf.mxu0
        %v2057 = vadd.f32 0.0, %v2056
        %2058 = vmatprep.mubr.bf16.mxu0 %v1575
        %2059 = vmatmul.mubr.bf16.gmra.mxu0 %v1574
        %v2060 = vpop.f32.mrf.mxu0
        %v2061 = vadd.f32 0.0, %v2060
        %v2062 = vpop.f32.mrf.mxu0
        %v2063 = vadd.f32 0.0, %v2062
        %v2064 = vpop.f32.mrf.mxu0
        %v2065 = vadd.f32 0.0, %v2064
        %v2066 = vpop.f32.mrf.mxu0
        %v2067 = vadd.f32 0.0, %v2066
        %2068 = vmatprep.mubr.bf16.mxu0 %v1579
        %2069 = vmatmul.mubr.bf16.gmra.mxu0 %v1578
        %v2070 = vpop.f32.mrf.mxu0
        %v2071 = vadd.f32 0.0, %v2070
        %v2072 = vpop.f32.mrf.mxu0
        %v2073 = vadd.f32 0.0, %v2072
        %v2074 = vpop.f32.mrf.mxu0
        %v2075 = vadd.f32 0.0, %v2074
        %v2076 = vpop.f32.mrf.mxu0
        %v2077 = vadd.f32 0.0, %v2076
        %2078 = vdwg.mxu0
        %2079 = vmatprep.subr.bf16.mxu0 %v1885
        %2080 = vmatpush1.bf16.msra.mxu0 %v1884
        %2081 = vmatprep.subr.bf16.mxu0 %v1883
        %2082 = vmatpush1.bf16.msra.mxu0 %v1882
        %2083 = vmatprep.subr.bf16.mxu0 %v1881
        %2084 = vmatpush1.bf16.msra.mxu0 %v1880
        %2085 = vmatprep.subr.bf16.mxu0 %v1879
        %2086 = vmatpush1.bf16.msra.mxu0 %v1878
        %2087 = vmatprep.subr.bf16.mxu0 %v1877
        %2088 = vmatpush1.bf16.msra.mxu0 %v1876
        %2089 = vmatprep.subr.bf16.mxu0 %v1875
        %2090 = vmatpush1.bf16.msra.mxu0 %v1874
        %2091 = vmatprep.subr.bf16.mxu0 %v1873
        %2092 = vmatpush1.bf16.msra.mxu0 %v1872
        %2093 = vmatprep.subr.bf16.mxu0 %v1871
        %2094 = vmatpush1.bf16.msra.mxu0 %v1870
        %2095 = vmatprep.subr.bf16.mxu0 %v1901
        %2096 = vmatpush2.bf16.msra.mxu0 %v1900
        %2097 = vmatprep.subr.bf16.mxu0 %v1899
        %2098 = vmatpush2.bf16.msra.mxu0 %v1898
        %2099 = vmatprep.subr.bf16.mxu0 %v1897
        %2100 = vmatpush2.bf16.msra.mxu0 %v1896
        %2101 = vmatprep.subr.bf16.mxu0 %v1895
        %2102 = vmatpush2.bf16.msra.mxu0 %v1894
        %2103 = vmatprep.subr.bf16.mxu0 %v1893
        %2104 = vmatpush2.bf16.msra.mxu0 %v1892
        %2105 = vmatprep.subr.bf16.mxu0 %v1891
        %2106 = vmatpush2.bf16.msra.mxu0 %v1890
        %2107 = vmatprep.subr.bf16.mxu0 %v1889
        %2108 = vmatpush2.bf16.msra.mxu0 %v1888
        %2109 = vmatprep.subr.bf16.mxu0 %v1887
        %2110 = vmatpush2.bf16.msra.mxu0 %v1886
        %2111 = vmatprep.mubr.bf16.mxu0 %v1553
        %2112 = vmatmul.mubr.bf16.gmra.mxu0 %v1552
        %v2113 = vpop.f32.mrf.mxu0
        %v2114 = vadd.f32 %v2001, %v2113
        %v2115 = vpop.f32.mrf.mxu0
        %v2116 = vadd.f32 %v2003, %v2115
        %v2117 = vpop.f32.mrf.mxu0
        %v2118 = vadd.f32 %v2005, %v2117
        %v2119 = vpop.f32.mrf.mxu0
        %v2120 = vadd.f32 %v2007, %v2119
        %2121 = vmatprep.mubr.bf16.mxu0 %v1557
        %2122 = vmatmul.mubr.bf16.gmra.mxu0 %v1556
        %v2123 = vpop.f32.mrf.mxu0
        %v2124 = vadd.f32 %v2011, %v2123
        %v2125 = vpop.f32.mrf.mxu0
        %v2126 = vadd.f32 %v2013, %v2125
        %v2127 = vpop.f32.mrf.mxu0
        %v2128 = vadd.f32 %v2015, %v2127
        %v2129 = vpop.f32.mrf.mxu0
        %v2130 = vadd.f32 %v2017, %v2129
        %2131 = vmatprep.mubr.bf16.mxu0 %v1561
        %2132 = vmatmul.mubr.bf16.gmra.mxu0 %v1560
        %v2133 = vpop.f32.mrf.mxu0
        %v2134 = vadd.f32 %v2021, %v2133
        %v2135 = vpop.f32.mrf.mxu0
        %v2136 = vadd.f32 %v2023, %v2135
        %v2137 = vpop.f32.mrf.mxu0
        %v2138 = vadd.f32 %v2025, %v2137
        %v2139 = vpop.f32.mrf.mxu0
        %v2140 = vadd.f32 %v2027, %v2139
        %2141 = vmatprep.mubr.bf16.mxu0 %v1565
        %2142 = vmatmul.mubr.bf16.gmra.mxu0 %v1564
        %v2143 = vpop.f32.mrf.mxu0
        %v2144 = vadd.f32 %v2031, %v2143
        %v2145 = vpop.f32.mrf.mxu0
        %v2146 = vadd.f32 %v2033, %v2145
        %v2147 = vpop.f32.mrf.mxu0
        %v2148 = vadd.f32 %v2035, %v2147
        %v2149 = vpop.f32.mrf.mxu0
        %v2150 = vadd.f32 %v2037, %v2149
        %2151 = vmatprep.mubr.bf16.mxu0 %v1569
        %2152 = vmatmul.mubr.bf16.gmra.mxu0 %v1568
        %v2153 = vpop.f32.mrf.mxu0
        %v2154 = vadd.f32 %v2041, %v2153
        %v2155 = vpop.f32.mrf.mxu0
        %v2156 = vadd.f32 %v2043, %v2155
        %v2157 = vpop.f32.mrf.mxu0
        %v2158 = vadd.f32 %v2045, %v2157
        %v2159 = vpop.f32.mrf.mxu0
        %v2160 = vadd.f32 %v2047, %v2159
        %2161 = vmatprep.mubr.bf16.mxu0 %v1573
        %2162 = vmatmul.mubr.bf16.gmra.mxu0 %v1572
        %v2163 = vpop.f32.mrf.mxu0
        %v2164 = vadd.f32 %v2051, %v2163
        %v2165 = vpop.f32.mrf.mxu0
        %v2166 = vadd.f32 %v2053, %v2165
        %v2167 = vpop.f32.mrf.mxu0
        %v2168 = vadd.f32 %v2055, %v2167
        %v2169 = vpop.f32.mrf.mxu0
        %v2170 = vadd.f32 %v2057, %v2169
        %2171 = vmatprep.mubr.bf16.mxu0 %v1577
        %2172 = vmatmul.mubr.bf16.gmra.mxu0 %v1576
        %v2173 = vpop.f32.mrf.mxu0
        %v2174 = vadd.f32 %v2061, %v2173
        %v2175 = vpop.f32.mrf.mxu0
        %v2176 = vadd.f32 %v2063, %v2175
        %v2177 = vpop.f32.mrf.mxu0
        %v2178 = vadd.f32 %v2065, %v2177
        %v2179 = vpop.f32.mrf.mxu0
        %v2180 = vadd.f32 %v2067, %v2179
        %2181 = vmatprep.mubr.bf16.mxu0 %v1581
        %2182 = vmatmul.mubr.bf16.gmra.mxu0 %v1580
        %v2183 = vpop.f32.mrf.mxu0
        %v2184 = vadd.f32 %v2071, %v2183
        %v2185 = vpop.f32.mrf.mxu0
        %v2186 = vadd.f32 %v2073, %v2185
        %v2187 = vpop.f32.mrf.mxu0
        %v2188 = vadd.f32 %v2075, %v2187
        %v2189 = vpop.f32.mrf.mxu0
        %v2190 = vadd.f32 %v2077, %v2189
        %2191 = vdwg.mxu0
        %v2192 = vpack.c.bf16 %v2118, %v2114
        %v2193 = vpack.c.bf16 %v2120, %v2116
        %v2194 = vpack.c.bf16 %v2128, %v2124
        %v2195 = vpack.c.bf16 %v2130, %v2126
        %v2196 = vpack.c.bf16 %v2138, %v2134
        %v2197 = vpack.c.bf16 %v2140, %v2136
        %v2198 = vpack.c.bf16 %v2148, %v2144
        %v2199 = vpack.c.bf16 %v2150, %v2146
        %v2200 = vpack.c.bf16 %v2158, %v2154
        %v2201 = vpack.c.bf16 %v2160, %v2156
        %v2202 = vpack.c.bf16 %v2168, %v2164
        %v2203 = vpack.c.bf16 %v2170, %v2166
        %v2204 = vpack.c.bf16 %v2178, %v2174
        %v2205 = vpack.c.bf16 %v2180, %v2176
        %v2206 = vpack.c.bf16 %v2188, %v2184
        %v2207 = vpack.c.bf16 %v2190, %v2186
        %v2208 = vld [vmem:[%s6] sm:$0x3]
        %v2211 = vunpack.c.l.s4 1966171168
        %v2212 = vunpack.c.0.s8 %v2211
        %v2213 = vlaneseq
        %v2214 = vshrl.u32 %v2213, 7
        %v2215 = vsub.s32 %v2212, %v2214
        %v2216 = vrot.slane %v2208, %v2215
        %v2217 = vcombine.high %v2216, %v2216
        %v2219 = vunpack.c.l.s4 1966171168
        %v2220 = vunpack.c.0.s8 %v2219
        %v2221 = vlaneseq
        %v2222 = vshrl.u32 %v2221, 7
        %v2223 = vsub.s32 %v2220, %v2222
        %v2224 = vrot.slane %v2216, %v2223
        %v2226 = vunpack.c.l.s4 1966171168
        %v2227 = vunpack.c.0.s8 %v2226
        %v2228 = vlaneseq
        %v2229 = vshrl.u32 %v2228, 7
        %v2230 = vsub.s32 %v2227, %v2229
        %v2231 = vrot.slane %v2217, %v2230
        %v2233 = vpack.i.b16 %v2224, %v2224
        %v2235 = vlaneseq
        %v2236 = vshrl.u32 %v2235, 7
        %v2237 = vsub.s32 0, %v2236
        %v2238 = vrot.slane %v2233, %v2237
        %v2240 = vpack.i.b16 %v2231, %v2231
        %v2242 = vlaneseq
        %v2243 = vshrl.u32 %v2242, 7
        %v2244 = vsub.s32 0, %v2243
        %v2245 = vrot.slane %v2240, %v2244
        %v2246 = vadd.bf16 %v2192, %v2238
        %v2247 = vadd.bf16 %v2193, %v2245
        %v2248 = vadd.bf16 %v2194, %v2238
        %v2249 = vadd.bf16 %v2195, %v2245
        %v2250 = vadd.bf16 %v2196, %v2238
        %v2251 = vadd.bf16 %v2197, %v2245
        %v2252 = vadd.bf16 %v2198, %v2238
        %v2253 = vadd.bf16 %v2199, %v2245
        %v2254 = vadd.bf16 %v2200, %v2238
        %v2255 = vadd.bf16 %v2201, %v2245
        %v2256 = vadd.bf16 %v2202, %v2238
        %v2257 = vadd.bf16 %v2203, %v2245
        %v2258 = vadd.bf16 %v2204, %v2238
        %v2259 = vadd.bf16 %v2205, %v2245
        %v2260 = vadd.bf16 %v2206, %v2238
        %v2261 = vadd.bf16 %v2207, %v2245
        %v2262 = vmax.bf16 %v2246, 0
        %v2263 = vmax.bf16 %v2247, 0
        %v2264 = vmax.bf16 %v2248, 0
        %v2265 = vmax.bf16 %v2249, 0
        %v2266 = vmax.bf16 %v2250, 0
        %v2267 = vmax.bf16 %v2251, 0
        %v2268 = vmax.bf16 %v2252, 0
        %v2269 = vmax.bf16 %v2253, 0
        %v2270 = vmax.bf16 %v2254, 0
        %v2271 = vmax.bf16 %v2255, 0
        %v2272 = vmax.bf16 %v2256, 0
        %v2273 = vmax.bf16 %v2257, 0
        %v2274 = vmax.bf16 %v2258, 0
        %v2275 = vmax.bf16 %v2259, 0
        %v2276 = vmax.bf16 %v2260, 0
        %v2277 = vmax.bf16 %v2261, 0
        %v2278 = vld [vmem:[%s7] sm:$0xf]
        %v2279 = vld [vmem:[%s7 + $0x4] sm:$0xf]
        %v2280 = vld [vmem:[%s7 + $0x8] sm:$0xf]
        %v2281 = vld [vmem:[%s7 + $0xc] sm:$0xf]
        %v2282 = vld [vmem:[%s7 + $0x10] sm:$0xf]
        %v2283 = vld [vmem:[%s7 + $0x14] sm:$0xf]
        %v2284 = vld [vmem:[%s7 + $0x18] sm:$0xf]
        %v2285 = vld [vmem:[%s7 + $0x1c] sm:$0xf]
        %v2286 = vld [vmem:[%s7 + $0x20] sm:$0xf]
        %v2287 = vld [vmem:[%s7 + $0x24] sm:$0xf]
        %v2288 = vld [vmem:[%s7 + $0x28] sm:$0xf]
        %v2289 = vld [vmem:[%s7 + $0x2c] sm:$0xf]
        %v2290 = vld [vmem:[%s7 + $0x30] sm:$0xf]
        %v2291 = vld [vmem:[%s7 + $0x34] sm:$0xf]
        %v2292 = vld [vmem:[%s7 + $0x38] sm:$0xf]
        %v2293 = vld [vmem:[%s7 + $0x3c] sm:$0xf]
        %v2294 = vld [vmem:[%s7 + $0x40] sm:$0xf]
        %v2295 = vld [vmem:[%s7 + $0x44] sm:$0xf]
        %v2296 = vld [vmem:[%s7 + $0x48] sm:$0xf]
        %v2297 = vld [vmem:[%s7 + $0x4c] sm:$0xf]
        %v2298 = vld [vmem:[%s7 + $0x50] sm:$0xf]
        %v2299 = vld [vmem:[%s7 + $0x54] sm:$0xf]
        %v2300 = vld [vmem:[%s7 + $0x58] sm:$0xf]
        %v2301 = vld [vmem:[%s7 + $0x5c] sm:$0xf]
        %v2302 = vld [vmem:[%s7 + $0x60] sm:$0xf]
        %v2303 = vld [vmem:[%s7 + $0x64] sm:$0xf]
        %v2304 = vld [vmem:[%s7 + $0x68] sm:$0xf]
        %v2305 = vld [vmem:[%s7 + $0x6c] sm:$0xf]
        %v2306 = vld [vmem:[%s7 + $0x70] sm:$0xf]
        %v2307 = vld [vmem:[%s7 + $0x74] sm:$0xf]
        %v2308 = vld [vmem:[%s7 + $0x78] sm:$0xf]
        %v2309 = vld [vmem:[%s7 + $0x7c] sm:$0xf]
        %v2342 = vunpack.c.l.b16 %v2278
        %v2343 = vunpack.c.l.b16 %v2279
        %v2344 = vunpack.c.l.b16 %v2280
        %v2345 = vunpack.c.l.b16 %v2281
        %v2346 = vunpack.c.l.b16 %v2282
        %v2347 = vunpack.c.l.b16 %v2283
        %v2348 = vunpack.c.l.b16 %v2284
        %v2349 = vunpack.c.l.b16 %v2285
        %v2350 = vunpack.c.l.b16 %v2286
        %v2351 = vunpack.c.l.b16 %v2287
        %v2352 = vunpack.c.l.b16 %v2288
        %v2353 = vunpack.c.l.b16 %v2289
        %v2354 = vunpack.c.l.b16 %v2290
        %v2355 = vunpack.c.l.b16 %v2291
        %v2356 = vunpack.c.l.b16 %v2292
        %v2357 = vunpack.c.l.b16 %v2293
        %v2358 = vunpack.c.l.b16 %v2294
        %v2359 = vunpack.c.l.b16 %v2295
        %v2360 = vunpack.c.l.b16 %v2296
        %v2361 = vunpack.c.l.b16 %v2297
        %v2362 = vunpack.c.l.b16 %v2298
        %v2363 = vunpack.c.l.b16 %v2299
        %v2364 = vunpack.c.l.b16 %v2300
        %v2365 = vunpack.c.l.b16 %v2301
        %v2366 = vunpack.c.l.b16 %v2302
        %v2367 = vunpack.c.l.b16 %v2303
        %v2368 = vunpack.c.l.b16 %v2304
        %v2369 = vunpack.c.l.b16 %v2305
        %v2370 = vunpack.c.l.b16 %v2306
        %v2371 = vunpack.c.l.b16 %v2307
        %v2372 = vunpack.c.l.b16 %v2308
        %v2373 = vunpack.c.l.b16 %v2309
        %v2374 = vpack.c.b16 %v2343, %v2342
        %v2375 = vpack.c.b16 %v2345, %v2344
        %v2376 = vpack.c.b16 %v2347, %v2346
        %v2377 = vpack.c.b16 %v2349, %v2348
        %v2378 = vpack.c.b16 %v2351, %v2350
        %v2379 = vpack.c.b16 %v2353, %v2352
        %v2380 = vpack.c.b16 %v2355, %v2354
        %v2381 = vpack.c.b16 %v2357, %v2356
        %v2382 = vpack.c.b16 %v2359, %v2358
        %v2383 = vpack.c.b16 %v2361, %v2360
        %v2384 = vpack.c.b16 %v2363, %v2362
        %v2385 = vpack.c.b16 %v2365, %v2364
        %v2386 = vpack.c.b16 %v2367, %v2366
        %v2387 = vpack.c.b16 %v2369, %v2368
        %v2388 = vpack.c.b16 %v2371, %v2370
        %v2389 = vpack.c.b16 %v2373, %v2372
        %2406 = vmatprep.subr.bf16.mxu0 0
        %2407 = vmatpush1.bf16.msra.mxu0 %v2381
        %2408 = vmatprep.subr.bf16.mxu0 0
        %2409 = vmatpush1.bf16.msra.mxu0 %v2380
        %2410 = vmatprep.subr.bf16.mxu0 0
        %2411 = vmatpush1.bf16.msra.mxu0 %v2379
        %2412 = vmatprep.subr.bf16.mxu0 0
        %2413 = vmatpush1.bf16.msra.mxu0 %v2378
        %2414 = vmatprep.subr.bf16.mxu0 0
        %2415 = vmatpush1.bf16.msra.mxu0 %v2377
        %2416 = vmatprep.subr.bf16.mxu0 0
        %2417 = vmatpush1.bf16.msra.mxu0 %v2376
        %2418 = vmatprep.subr.bf16.mxu0 0
        %2419 = vmatpush1.bf16.msra.mxu0 %v2375
        %2420 = vmatprep.subr.bf16.mxu0 0
        %2421 = vmatpush1.bf16.msra.mxu0 %v2374
        %2422 = vmatprep.subr.bf16.mxu0 0
        %2423 = vmatpush2.bf16.msra.mxu0 %v2389
        %2424 = vmatprep.subr.bf16.mxu0 0
        %2425 = vmatpush2.bf16.msra.mxu0 %v2388
        %2426 = vmatprep.subr.bf16.mxu0 0
        %2427 = vmatpush2.bf16.msra.mxu0 %v2387
        %2428 = vmatprep.subr.bf16.mxu0 0
        %2429 = vmatpush2.bf16.msra.mxu0 %v2386
        %2430 = vmatprep.subr.bf16.mxu0 0
        %2431 = vmatpush2.bf16.msra.mxu0 %v2385
        %2432 = vmatprep.subr.bf16.mxu0 0
        %2433 = vmatpush2.bf16.msra.mxu0 %v2384
        %2434 = vmatprep.subr.bf16.mxu0 0
        %2435 = vmatpush2.bf16.msra.mxu0 %v2383
        %2436 = vmatprep.subr.bf16.mxu0 0
        %2437 = vmatpush2.bf16.msra.mxu0 %v2382
        %2438 = vmatprep.mubr.bf16.mxu0 %v2263
        %2439 = vmatmul.mubr.bf16.gmra.mxu0 %v2262
        %v2440 = vpop.f32.mrf.mxu0
        %v2441 = vadd.f32 0.0, %v2440
        %v2442 = vpop.f32.mrf.mxu0
        %v2443 = vpop.f32.mrf.mxu0
        %v2444 = vadd.f32 0.0, %v2443
        %v2445 = vpop.f32.mrf.mxu0
        %2446 = vmatprep.mubr.bf16.mxu0 %v2265
        %2447 = vmatmul.mubr.bf16.gmra.mxu0 %v2264
        %v2448 = vpop.f32.mrf.mxu0
        %v2449 = vadd.f32 0.0, %v2448
        %v2450 = vpop.f32.mrf.mxu0
        %v2451 = vpop.f32.mrf.mxu0
        %v2452 = vadd.f32 0.0, %v2451
        %v2453 = vpop.f32.mrf.mxu0
        %2454 = vmatprep.mubr.bf16.mxu0 %v2267
        %2455 = vmatmul.mubr.bf16.gmra.mxu0 %v2266
        %v2456 = vpop.f32.mrf.mxu0
        %v2457 = vadd.f32 0.0, %v2456
        %v2458 = vpop.f32.mrf.mxu0
        %v2459 = vpop.f32.mrf.mxu0
        %v2460 = vadd.f32 0.0, %v2459
        %v2461 = vpop.f32.mrf.mxu0
        %2462 = vmatprep.mubr.bf16.mxu0 %v2269
        %2463 = vmatmul.mubr.bf16.gmra.mxu0 %v2268
        %v2464 = vpop.f32.mrf.mxu0
        %v2465 = vadd.f32 0.0, %v2464
        %v2466 = vpop.f32.mrf.mxu0
        %v2467 = vpop.f32.mrf.mxu0
        %v2468 = vadd.f32 0.0, %v2467
        %v2469 = vpop.f32.mrf.mxu0
        %2470 = vmatprep.mubr.bf16.mxu0 %v2271
        %2471 = vmatmul.mubr.bf16.gmra.mxu0 %v2270
        %v2472 = vpop.f32.mrf.mxu0
        %v2473 = vadd.f32 0.0, %v2472
        %v2474 = vpop.f32.mrf.mxu0
        %v2475 = vpop.f32.mrf.mxu0
        %v2476 = vadd.f32 0.0, %v2475
        %v2477 = vpop.f32.mrf.mxu0
        %2478 = vmatprep.mubr.bf16.mxu0 %v2273
        %2479 = vmatmul.mubr.bf16.gmra.mxu0 %v2272
        %v2480 = vpop.f32.mrf.mxu0
        %v2481 = vadd.f32 0.0, %v2480
        %v2482 = vpop.f32.mrf.mxu0
        %v2483 = vpop.f32.mrf.mxu0
        %v2484 = vadd.f32 0.0, %v2483
        %v2485 = vpop.f32.mrf.mxu0
        %2486 = vmatprep.mubr.bf16.mxu0 %v2275
        %2487 = vmatmul.mubr.bf16.gmra.mxu0 %v2274
        %v2488 = vpop.f32.mrf.mxu0
        %v2489 = vadd.f32 0.0, %v2488
        %v2490 = vpop.f32.mrf.mxu0
        %v2491 = vpop.f32.mrf.mxu0
        %v2492 = vadd.f32 0.0, %v2491
        %v2493 = vpop.f32.mrf.mxu0
        %2494 = vmatprep.mubr.bf16.mxu0 %v2277
        %2495 = vmatmul.mubr.bf16.gmra.mxu0 %v2276
        %v2496 = vpop.f32.mrf.mxu0
        %v2497 = vadd.f32 0.0, %v2496
        %v2498 = vpop.f32.mrf.mxu0
        %v2499 = vpop.f32.mrf.mxu0
        %v2500 = vadd.f32 0.0, %v2499
        %v2501 = vpop.f32.mrf.mxu0
        %2502 = vdwg.mxu0
        %v2503 = vpack.c.bf16 %v2444, %v2441
        %v2504 = vpack.c.bf16 %v2452, %v2449
        %v2505 = vpack.c.bf16 %v2460, %v2457
        %v2506 = vpack.c.bf16 %v2468, %v2465
        %v2507 = vpack.c.bf16 %v2476, %v2473
        %v2508 = vpack.c.bf16 %v2484, %v2481
        %v2509 = vpack.c.bf16 %v2492, %v2489
        %v2510 = vpack.c.bf16 %v2500, %v2497
        %v2511 = vld [vmem:[%s8] sm:$0x1]
        %v2513 = vpack.i.b16 %v2511, %v2511
        %v2515 = vlaneseq
        %v2516 = vshrl.u32 %v2515, 7
        %v2517 = vsub.s32 0, %v2516
        %v2518 = vrot.slane %v2513, %v2517
        %v2519 = vadd.bf16 %v2503, %v2518
        %v2520 = vadd.bf16 %v2504, %v2518
        %v2521 = vadd.bf16 %v2505, %v2518
        %v2522 = vadd.bf16 %v2506, %v2518
        %v2523 = vadd.bf16 %v2507, %v2518
        %v2524 = vadd.bf16 %v2508, %v2518
        %v2525 = vadd.bf16 %v2509, %v2518
        %v2526 = vadd.bf16 %v2510, %v2518
        %v2527 = vmax.bf16 %v2519, 0
        %v2528 = vmax.bf16 %v2520, 0
        %v2529 = vmax.bf16 %v2521, 0
        %v2530 = vmax.bf16 %v2522, 0
        %v2531 = vmax.bf16 %v2523, 0
        %v2532 = vmax.bf16 %v2524, 0
        %v2533 = vmax.bf16 %v2525, 0
        %v2534 = vmax.bf16 %v2526, 0
        %v2535 = vld [vmem:[#allocation7] sm:$0xf]
        %v2536 = vld [vmem:[#allocation7 + $0x4] sm:$0xf]
        %v2537 = vld [vmem:[#allocation7 + $0x8] sm:$0xf]
        %v2538 = vld [vmem:[#allocation7 + $0xc] sm:$0xf]
        %v2539 = vld [vmem:[#allocation7 + $0x10] sm:$0xf]
        %v2540 = vld [vmem:[#allocation7 + $0x14] sm:$0xf]
        %v2541 = vld [vmem:[#allocation7 + $0x18] sm:$0xf]
        %v2542 = vld [vmem:[#allocation7 + $0x1c] sm:$0xf]
        %v2543 = vld [vmem:[#allocation7 + $0x20] sm:$0xf]
        %v2544 = vld [vmem:[#allocation7 + $0x24] sm:$0xf]
        %v2545 = vld [vmem:[#allocation7 + $0x28] sm:$0xf]
        %v2546 = vld [vmem:[#allocation7 + $0x2c] sm:$0xf]
        %v2547 = vld [vmem:[#allocation7 + $0x30] sm:$0xf]
        %v2548 = vld [vmem:[#allocation7 + $0x34] sm:$0xf]
        %v2549 = vld [vmem:[#allocation7 + $0x38] sm:$0xf]
        %v2550 = vld [vmem:[#allocation7 + $0x3c] sm:$0xf]
        %v2567 = vunpack.c.l.b16 %v2535
        %v2568 = vunpack.c.l.b16 %v2536
        %v2569 = vunpack.c.l.b16 %v2537
        %v2570 = vunpack.c.l.b16 %v2538
        %v2571 = vunpack.c.l.b16 %v2539
        %v2572 = vunpack.c.l.b16 %v2540
        %v2573 = vunpack.c.l.b16 %v2541
        %v2574 = vunpack.c.l.b16 %v2542
        %v2575 = vunpack.c.l.b16 %v2543
        %v2576 = vunpack.c.l.b16 %v2544
        %v2577 = vunpack.c.l.b16 %v2545
        %v2578 = vunpack.c.l.b16 %v2546
        %v2579 = vunpack.c.l.b16 %v2547
        %v2580 = vunpack.c.l.b16 %v2548
        %v2581 = vunpack.c.l.b16 %v2549
        %v2582 = vunpack.c.l.b16 %v2550
        %v2583 = vpack.c.b16 %v2568, %v2567
        %v2584 = vpack.c.b16 %v2570, %v2569
        %v2585 = vpack.c.b16 %v2572, %v2571
        %v2586 = vpack.c.b16 %v2574, %v2573
        %v2587 = vpack.c.b16 %v2576, %v2575
        %v2588 = vpack.c.b16 %v2578, %v2577
        %v2589 = vpack.c.b16 %v2580, %v2579
        %v2590 = vpack.c.b16 %v2582, %v2581
        %2599 = vmatprep.subr.bf16.mxu0 0
        %2600 = vmatpush1.bf16.msra.mxu0 %v2590
        %2601 = vmatprep.subr.bf16.mxu0 0
        %2602 = vmatpush1.bf16.msra.mxu0 %v2589
        %2603 = vmatprep.subr.bf16.mxu0 0
        %2604 = vmatpush1.bf16.msra.mxu0 %v2588
        %2605 = vmatprep.subr.bf16.mxu0 0
        %2606 = vmatpush1.bf16.msra.mxu0 %v2587
        %2607 = vmatprep.subr.bf16.mxu0 0
        %2608 = vmatpush1.bf16.msra.mxu0 %v2586
        %2609 = vmatprep.subr.bf16.mxu0 0
        %2610 = vmatpush1.bf16.msra.mxu0 %v2585
        %2611 = vmatprep.subr.bf16.mxu0 0
        %2612 = vmatpush1.bf16.msra.mxu0 %v2584
        %2613 = vmatprep.subr.bf16.mxu0 0
        %2614 = vmatpush1.bf16.msra.mxu0 %v2583
        %2615 = vmatprep.subr.bf16.mxu0 0
        %2616 = vmatpush2.bf16.msra.mxu0 0
        %2617 = vmatprep.subr.bf16.mxu0 0
        %2618 = vmatpush2.bf16.msra.mxu0 0
        %2619 = vmatprep.subr.bf16.mxu0 0
        %2620 = vmatpush2.bf16.msra.mxu0 0
        %2621 = vmatprep.subr.bf16.mxu0 0
        %2622 = vmatpush2.bf16.msra.mxu0 0
        %2623 = vmatprep.subr.bf16.mxu0 0
        %2624 = vmatpush2.bf16.msra.mxu0 0
        %2625 = vmatprep.subr.bf16.mxu0 0
        %2626 = vmatpush2.bf16.msra.mxu0 0
        %2627 = vmatprep.subr.bf16.mxu0 0
        %2628 = vmatpush2.bf16.msra.mxu0 0
        %2629 = vmatprep.subr.bf16.mxu0 0
        %2630 = vmatpush2.bf16.msra.mxu0 0
        %2631 = vmatprep.mubr.bf16.mxu0 0
        %2632 = vmatmul.mubr.bf16.gmra.mxu0 %v2527
        %v2633 = vpop.f32.mrf.mxu0
        %v2634 = vadd.f32 0.0, %v2633
        %v2635 = vpop.f32.mrf.mxu0
        %v2636 = vpop.f32.mrf.mxu0
        %v2637 = vadd.f32 0.0, %v2636
        %v2638 = vpop.f32.mrf.mxu0
        %2639 = vmatprep.mubr.bf16.mxu0 0
        %2640 = vmatmul.mubr.bf16.gmra.mxu0 %v2528
        %v2641 = vpop.f32.mrf.mxu0
        %v2642 = vadd.f32 0.0, %v2641
        %v2643 = vpop.f32.mrf.mxu0
        %v2644 = vpop.f32.mrf.mxu0
        %v2645 = vadd.f32 0.0, %v2644
        %v2646 = vpop.f32.mrf.mxu0
        %2647 = vmatprep.mubr.bf16.mxu0 0
        %2648 = vmatmul.mubr.bf16.gmra.mxu0 %v2529
        %v2649 = vpop.f32.mrf.mxu0
        %v2650 = vadd.f32 0.0, %v2649
        %v2651 = vpop.f32.mrf.mxu0
        %v2652 = vpop.f32.mrf.mxu0
        %v2653 = vadd.f32 0.0, %v2652
        %v2654 = vpop.f32.mrf.mxu0
        %2655 = vmatprep.mubr.bf16.mxu0 0
        %2656 = vmatmul.mubr.bf16.gmra.mxu0 %v2530
        %v2657 = vpop.f32.mrf.mxu0
        %v2658 = vadd.f32 0.0, %v2657
        %v2659 = vpop.f32.mrf.mxu0
        %v2660 = vpop.f32.mrf.mxu0
        %v2661 = vadd.f32 0.0, %v2660
        %v2662 = vpop.f32.mrf.mxu0
        %2663 = vmatprep.mubr.bf16.mxu0 0
        %2664 = vmatmul.mubr.bf16.gmra.mxu0 %v2531
        %v2665 = vpop.f32.mrf.mxu0
        %v2666 = vadd.f32 0.0, %v2665
        %v2667 = vpop.f32.mrf.mxu0
        %v2668 = vpop.f32.mrf.mxu0
        %v2669 = vadd.f32 0.0, %v2668
        %v2670 = vpop.f32.mrf.mxu0
        %2671 = vmatprep.mubr.bf16.mxu0 0
        %2672 = vmatmul.mubr.bf16.gmra.mxu0 %v2532
        %v2673 = vpop.f32.mrf.mxu0
        %v2674 = vadd.f32 0.0, %v2673
        %v2675 = vpop.f32.mrf.mxu0
        %v2676 = vpop.f32.mrf.mxu0
        %v2677 = vadd.f32 0.0, %v2676
        %v2678 = vpop.f32.mrf.mxu0
        %2679 = vmatprep.mubr.bf16.mxu0 0
        %2680 = vmatmul.mubr.bf16.gmra.mxu0 %v2533
        %v2681 = vpop.f32.mrf.mxu0
        %v2682 = vadd.f32 0.0, %v2681
        %v2683 = vpop.f32.mrf.mxu0
        %v2684 = vpop.f32.mrf.mxu0
        %v2685 = vadd.f32 0.0, %v2684
        %v2686 = vpop.f32.mrf.mxu0
        %2687 = vmatprep.mubr.bf16.mxu0 0
        %2688 = vmatmul.mubr.bf16.gmra.mxu0 %v2534
        %v2689 = vpop.f32.mrf.mxu0
        %v2690 = vadd.f32 0.0, %v2689
        %v2691 = vpop.f32.mrf.mxu0
        %v2692 = vpop.f32.mrf.mxu0
        %v2693 = vadd.f32 0.0, %v2692
        %v2694 = vpop.f32.mrf.mxu0
        %2695 = vdwg.mxu0
        %v2696 = vpack.c.bf16 %v2637, %v2634
        %v2697 = vpack.c.bf16 %v2645, %v2642
        %v2698 = vpack.c.bf16 %v2653, %v2650
        %v2699 = vpack.c.bf16 %v2661, %v2658
        %v2700 = vpack.c.bf16 %v2669, %v2666
        %v2701 = vpack.c.bf16 %v2677, %v2674
        %v2702 = vpack.c.bf16 %v2685, %v2682
        %v2703 = vpack.c.bf16 %v2693, %v2690
        %v2704 = vld [vmem:[%s10] sm:$0x1]
        %v2706 = vpack.i.b16 %v2704, %v2704
        %v2708 = vlaneseq
        %v2709 = vshrl.u32 %v2708, 7
        %v2710 = vsub.s32 0, %v2709
        %v2711 = vrot.slane %v2706, %v2710
        %v2712 = vadd.bf16 %v2696, %v2711
        %v2713 = vadd.bf16 %v2697, %v2711
        %v2714 = vadd.bf16 %v2698, %v2711
        %v2715 = vadd.bf16 %v2699, %v2711
        %v2716 = vadd.bf16 %v2700, %v2711
        %v2717 = vadd.bf16 %v2701, %v2711
        %v2718 = vadd.bf16 %v2702, %v2711
        %v2719 = vadd.bf16 %v2703, %v2711
        %v2720 = vmax.bf16 %v2712, 0
        %v2721 = vmax.bf16 %v2713, 0
        %v2722 = vmax.bf16 %v2714, 0
        %v2723 = vmax.bf16 %v2715, 0
        %v2724 = vmax.bf16 %v2716, 0
        %v2725 = vmax.bf16 %v2717, 0
        %v2726 = vmax.bf16 %v2718, 0
        %v2727 = vmax.bf16 %v2719, 0
        %v2728 = vld [vmem:[#allocation9] sm:$0xf]
        %v2729 = vld [vmem:[#allocation9 + $0x4] sm:$0xf]
        %v2730 = vld [vmem:[#allocation9 + $0x8] sm:$0xf]
        %v2731 = vld [vmem:[#allocation9 + $0xc] sm:$0xf]
        %v2732 = vld [vmem:[#allocation9 + $0x10] sm:$0xf]
        %v2733 = vld [vmem:[#allocation9 + $0x14] sm:$0xf]
        %v2734 = vld [vmem:[#allocation9 + $0x18] sm:$0xf]
        %v2735 = vld [vmem:[#allocation9 + $0x1c] sm:$0xf]
        %v2736 = vld [vmem:[#allocation9 + $0x20] sm:$0xf]
        %v2737 = vld [vmem:[#allocation9 + $0x24] sm:$0xf]
        %v2738 = vld [vmem:[#allocation9 + $0x28] sm:$0xf]
        %v2739 = vld [vmem:[#allocation9 + $0x2c] sm:$0xf]
        %v2740 = vld [vmem:[#allocation9 + $0x30] sm:$0xf]
        %v2741 = vld [vmem:[#allocation9 + $0x34] sm:$0xf]
        %v2742 = vld [vmem:[#allocation9 + $0x38] sm:$0xf]
        %v2743 = vld [vmem:[#allocation9 + $0x3c] sm:$0xf]
        %v2760 = vunpack.c.l.b16 %v2728
        %v2761 = vunpack.c.l.b16 %v2729
        %v2762 = vunpack.c.l.b16 %v2730
        %v2763 = vunpack.c.l.b16 %v2731
        %v2764 = vunpack.c.l.b16 %v2732
        %v2765 = vunpack.c.l.b16 %v2733
        %v2766 = vunpack.c.l.b16 %v2734
        %v2767 = vunpack.c.l.b16 %v2735
        %v2768 = vunpack.c.l.b16 %v2736
        %v2769 = vunpack.c.l.b16 %v2737
        %v2770 = vunpack.c.l.b16 %v2738
        %v2771 = vunpack.c.l.b16 %v2739
        %v2772 = vunpack.c.l.b16 %v2740
        %v2773 = vunpack.c.l.b16 %v2741
        %v2774 = vunpack.c.l.b16 %v2742
        %v2775 = vunpack.c.l.b16 %v2743
        %v2776 = vpack.c.b16 %v2761, %v2760
        %v2777 = vpack.c.b16 %v2763, %v2762
        %v2778 = vpack.c.b16 %v2765, %v2764
        %v2779 = vpack.c.b16 %v2767, %v2766
        %v2780 = vpack.c.b16 %v2769, %v2768
        %v2781 = vpack.c.b16 %v2771, %v2770
        %v2782 = vpack.c.b16 %v2773, %v2772
        %v2783 = vpack.c.b16 %v2775, %v2774
        %2792 = vmatprep.subr.bf16.mxu0 0
        %2793 = vmatpush1.bf16.msra.mxu0 %v2783
        %2794 = vmatprep.subr.bf16.mxu0 0
        %2795 = vmatpush1.bf16.msra.mxu0 %v2782
        %2796 = vmatprep.subr.bf16.mxu0 0
        %2797 = vmatpush1.bf16.msra.mxu0 %v2781
        %2798 = vmatprep.subr.bf16.mxu0 0
        %2799 = vmatpush1.bf16.msra.mxu0 %v2780
        %2800 = vmatprep.subr.bf16.mxu0 0
        %2801 = vmatpush1.bf16.msra.mxu0 %v2779
        %2802 = vmatprep.subr.bf16.mxu0 0
        %2803 = vmatpush1.bf16.msra.mxu0 %v2778
        %2804 = vmatprep.subr.bf16.mxu0 0
        %2805 = vmatpush1.bf16.msra.mxu0 %v2777
        %2806 = vmatprep.subr.bf16.mxu0 0
        %2807 = vmatpush1.bf16.msra.mxu0 %v2776
        %2808 = vmatprep.subr.bf16.mxu0 0
        %2809 = vmatpush2.bf16.msra.mxu0 0
        %2810 = vmatprep.subr.bf16.mxu0 0
        %2811 = vmatpush2.bf16.msra.mxu0 0
        %2812 = vmatprep.subr.bf16.mxu0 0
        %2813 = vmatpush2.bf16.msra.mxu0 0
        %2814 = vmatprep.subr.bf16.mxu0 0
        %2815 = vmatpush2.bf16.msra.mxu0 0
        %2816 = vmatprep.subr.bf16.mxu0 0
        %2817 = vmatpush2.bf16.msra.mxu0 0
        %2818 = vmatprep.subr.bf16.mxu0 0
        %2819 = vmatpush2.bf16.msra.mxu0 0
        %2820 = vmatprep.subr.bf16.mxu0 0
        %2821 = vmatpush2.bf16.msra.mxu0 0
        %2822 = vmatprep.subr.bf16.mxu0 0
        %2823 = vmatpush2.bf16.msra.mxu0 0
        %2824 = vmatprep.mubr.bf16.mxu0 0
        %2825 = vmatmul.mubr.bf16.gmra.mxu0 %v2720
        %v2826 = vpop.f32.mrf.mxu0
        %v2827 = vadd.f32 0.0, %v2826
        %v2828 = vpop.f32.mrf.mxu0
        %v2829 = vpop.f32.mrf.mxu0
        %v2830 = vadd.f32 0.0, %v2829
        %v2831 = vpop.f32.mrf.mxu0
        %2832 = vmatprep.mubr.bf16.mxu0 0
        %2833 = vmatmul.mubr.bf16.gmra.mxu0 %v2721
        %v2834 = vpop.f32.mrf.mxu0
        %v2835 = vadd.f32 0.0, %v2834
        %v2836 = vpop.f32.mrf.mxu0
        %v2837 = vpop.f32.mrf.mxu0
        %v2838 = vadd.f32 0.0, %v2837
        %v2839 = vpop.f32.mrf.mxu0
        %2840 = vmatprep.mubr.bf16.mxu0 0
        %2841 = vmatmul.mubr.bf16.gmra.mxu0 %v2722
        %v2842 = vpop.f32.mrf.mxu0
        %v2843 = vadd.f32 0.0, %v2842
        %v2844 = vpop.f32.mrf.mxu0
        %v2845 = vpop.f32.mrf.mxu0
        %v2846 = vadd.f32 0.0, %v2845
        %v2847 = vpop.f32.mrf.mxu0
        %2848 = vmatprep.mubr.bf16.mxu0 0
        %2849 = vmatmul.mubr.bf16.gmra.mxu0 %v2723
        %v2850 = vpop.f32.mrf.mxu0
        %v2851 = vadd.f32 0.0, %v2850
        %v2852 = vpop.f32.mrf.mxu0
        %v2853 = vpop.f32.mrf.mxu0
        %v2854 = vadd.f32 0.0, %v2853
        %v2855 = vpop.f32.mrf.mxu0
        %2856 = vmatprep.mubr.bf16.mxu0 0
        %2857 = vmatmul.mubr.bf16.gmra.mxu0 %v2724
        %v2858 = vpop.f32.mrf.mxu0
        %v2859 = vadd.f32 0.0, %v2858
        %v2860 = vpop.f32.mrf.mxu0
        %v2861 = vpop.f32.mrf.mxu0
        %v2862 = vadd.f32 0.0, %v2861
        %v2863 = vpop.f32.mrf.mxu0
        %2864 = vmatprep.mubr.bf16.mxu0 0
        %2865 = vmatmul.mubr.bf16.gmra.mxu0 %v2725
        %v2866 = vpop.f32.mrf.mxu0
        %v2867 = vadd.f32 0.0, %v2866
        %v2868 = vpop.f32.mrf.mxu0
        %v2869 = vpop.f32.mrf.mxu0
        %v2870 = vadd.f32 0.0, %v2869
        %v2871 = vpop.f32.mrf.mxu0
        %2872 = vmatprep.mubr.bf16.mxu0 0
        %2873 = vmatmul.mubr.bf16.gmra.mxu0 %v2726
        %v2874 = vpop.f32.mrf.mxu0
        %v2875 = vadd.f32 0.0, %v2874
        %v2876 = vpop.f32.mrf.mxu0
        %v2877 = vpop.f32.mrf.mxu0
        %v2878 = vadd.f32 0.0, %v2877
        %v2879 = vpop.f32.mrf.mxu0
        %2880 = vmatprep.mubr.bf16.mxu0 0
        %2881 = vmatmul.mubr.bf16.gmra.mxu0 %v2727
        %v2882 = vpop.f32.mrf.mxu0
        %v2883 = vadd.f32 0.0, %v2882
        %v2884 = vpop.f32.mrf.mxu0
        %v2885 = vpop.f32.mrf.mxu0
        %v2886 = vadd.f32 0.0, %v2885
        %v2887 = vpop.f32.mrf.mxu0
        %2888 = vdwg.mxu0
        %v2889 = vpack.c.bf16 %v2830, %v2827
        %v2890 = vpack.c.bf16 %v2838, %v2835
        %v2891 = vpack.c.bf16 %v2846, %v2843
        %v2892 = vpack.c.bf16 %v2854, %v2851
        %v2893 = vpack.c.bf16 %v2862, %v2859
        %v2894 = vpack.c.bf16 %v2870, %v2867
        %v2895 = vpack.c.bf16 %v2878, %v2875
        %v2896 = vpack.c.bf16 %v2886, %v2883
        %v2897 = vld [vmem:[%s12] sm:$0x1]
        %v2899 = vpack.i.b16 %v2897, %v2897
        %v2901 = vlaneseq
        %v2902 = vshrl.u32 %v2901, 7
        %v2903 = vsub.s32 0, %v2902
        %v2904 = vrot.slane %v2899, %v2903
        %v2905 = vadd.bf16 %v2889, %v2904
        %v2906 = vadd.bf16 %v2890, %v2904
        %v2907 = vadd.bf16 %v2891, %v2904
        %v2908 = vadd.bf16 %v2892, %v2904
        %v2909 = vadd.bf16 %v2893, %v2904
        %v2910 = vadd.bf16 %v2894, %v2904
        %v2911 = vadd.bf16 %v2895, %v2904
        %v2912 = vadd.bf16 %v2896, %v2904
        %v2921 = vunpack.c.l.b16 %v2905
        %v2922 = vunpack.c.h.b16 %v2905
        %v2923 = vunpack.c.l.b16 %v2906
        %v2924 = vunpack.c.h.b16 %v2906
        %v2925 = vunpack.c.l.b16 %v2907
        %v2926 = vunpack.c.h.b16 %v2907
        %v2927 = vunpack.c.l.b16 %v2908
        %v2928 = vunpack.c.h.b16 %v2908
        %v2929 = vunpack.c.l.b16 %v2909
        %v2930 = vunpack.c.h.b16 %v2909
        %v2931 = vunpack.c.l.b16 %v2910
        %v2932 = vunpack.c.h.b16 %v2910
        %v2933 = vunpack.c.l.b16 %v2911
        %v2934 = vunpack.c.h.b16 %v2911
        %v2935 = vunpack.c.l.b16 %v2912
        %v2936 = vunpack.c.h.b16 %v2912
        %v2937 = vpack.c.b16 %v2921, %v2921
        %v2938 = vpack.c.b16 %v2922, %v2922
        %v2939 = vpack.c.b16 %v2923, %v2923
        %v2940 = vpack.c.b16 %v2924, %v2924
        %v2941 = vpack.c.b16 %v2925, %v2925
        %v2942 = vpack.c.b16 %v2926, %v2926
        %v2943 = vpack.c.b16 %v2927, %v2927
        %v2944 = vpack.c.b16 %v2928, %v2928
        %v2945 = vpack.c.b16 %v2929, %v2929
        %v2946 = vpack.c.b16 %v2930, %v2930
        %v2947 = vpack.c.b16 %v2931, %v2931
        %v2948 = vpack.c.b16 %v2932, %v2932
        %v2949 = vpack.c.b16 %v2933, %v2933
        %v2950 = vpack.c.b16 %v2934, %v2934
        %v2951 = vpack.c.b16 %v2935, %v2935
        %v2952 = vpack.c.b16 %v2936, %v2936
        %2969 = vst [vmem:[%s515] sm:$0xf] %v2937
        %2970 = vst [vmem:[%s515 + $0x4] sm:$0xf] %v2938
        %2971 = vst [vmem:[%s515 + $0x8] sm:$0xf] %v2939
        %2972 = vst [vmem:[%s515 + $0xc] sm:$0xf] %v2940
        %2973 = vst [vmem:[%s515 + $0x10] sm:$0xf] %v2941
        %2974 = vst [vmem:[%s515 + $0x14] sm:$0xf] %v2942
        %2975 = vst [vmem:[%s515 + $0x18] sm:$0xf] %v2943
        %2976 = vst [vmem:[%s515 + $0x1c] sm:$0xf] %v2944
        %2977 = vst [vmem:[%s515 + $0x20] sm:$0xf] %v2945
        %2978 = vst [vmem:[%s515 + $0x24] sm:$0xf] %v2946
        %2979 = vst [vmem:[%s515 + $0x28] sm:$0xf] %v2947
        %2980 = vst [vmem:[%s515 + $0x2c] sm:$0xf] %v2948
        %2981 = vst [vmem:[%s515 + $0x30] sm:$0xf] %v2949
        %2982 = vst [vmem:[%s515 + $0x34] sm:$0xf] %v2950
        %2983 = vst [vmem:[%s515 + $0x38] sm:$0xf] %v2951
        %2984 = vst [vmem:[%s515 + $0x3c] sm:$0xf] %v2952
        %s2985 = smul.u32 16, %s27
        %p2986 = scmp.lt.s32.totalorder %s2985, 31
        %s2987 = scalar_select %p2986, %s2985, 31
        %s2988 = smul.addr %s2987, 4
        %s2989 = scalar_lea.vmem %s13, %s2988
        // Predicated region
        $region93: #{denser_nn_forward.1} parent=71 // pred_check
          %p2990 = pneg %p323
        $region94: #{denser_nn_forward.1} parent=71 // pred_check_branch
          %2992 = sbr.rel (%p2990) target = $region96
        $region95: #{denser_nn_forward.1} parent=71 // pred_region
          %s2993 = smul.u32 16, %s27
        $region96: #{denser_nn_forward.1} parent=71 // pred_fallthru
          _
      $region72: #{denser_nn_forward.1} parent=5 // pred_fallthru
        _
      %p2994 = scmp.le.s32.totalorder 2, %s22
      // Predicated region
      $region97: #{denser_nn_forward.1} parent=5 // pred_check
        %p2995 = pneg %p2994
      $region98: #{denser_nn_forward.1} parent=5 // pred_check_branch
        %2997 = sbr.rel (%p2995) target = $region100
      $region99: #{denser_nn_forward.1} parent=5 // pred_region
        %s2998 = ssub.s32 %s22, 2
        // Predicated region
        $region101: #{denser_nn_forward.1} parent=99 // pred_check
          %p2999 = pneg %p329
        $region102: #{denser_nn_forward.1} parent=99 // pred_check_branch
          %3001 = sbr.rel (%p2999) target = $region104
        $region103: #{denser_nn_forward.1} parent=99 // pred_region
          %s3002 = smul.u32 16, %s28
          %p3003 = scmp.lt.s32.totalorder %s3002, 31
          %s3004 = scalar_select %p3003, %s3002, 31
          %s3005 = smul.addr %s3004, 4
          %s3006 = scalar_lea.vmem %s13, %s3005
        $region104: #{denser_nn_forward.1} parent=99 // pred_fallthru
          _
      $region100: #{denser_nn_forward.1} parent=5 // pred_fallthru
        _
    $region6: #{denser_nn_forward.1} parent=1 // loop_footer
      %s26 = sadd.s32 1, %s22
    $region7: #{denser_nn_forward.1} parent=1 // loop_footer_branch
      %21 = sbr.rel target = $region3
    $region8: #{denser_nn_forward.1} parent=1 // loop_exit
      _
    %3007 = vsyncpa [#allocation3], 1
    %s3008 = scalar_lea.sflag [#allocation3], 1
    %3009 = vsyncpa %s3008, 1
    %3010 = vsyncpa [#allocation5], 1
    %3011 = vsyncpa [#allocation8], 1

</llo_original>
